<compile_context>
chip_gen: v5e
topology: v5e:2x2
jax: 0.10.0
libtpu: 0.0.40
codegen_flags: <defaults>
</compile_context>

<pallas_src>
import jax
import jax.numpy as jnp
from jax import lax
from jax.experimental import pallas as pl
from jax.experimental.pallas import tpu as pltpu

# Small, module-consistent shapes (embedding_dim=D, n_heads, n_layers, feedforward_dim=FF).
B, S, D = 2, 8, 32
N_HEADS = 4
N_LAYERS = 2
FF = 64
HEAD_DIM = D // N_HEADS
EPS_LAYER = 1e-5   # nn.TransformerEncoderLayer default layer_norm_eps
EPS_FINAL = 1e-6   # final nn.LayerNorm(embedding_dim, eps=1e-6)

LANES = 128        # pack every small vector / weight slab to full lane width
# Row offsets inside the packed per-layer weight slab (rows, 128):
R_QKV = 0                  # rows [0, D)      : wqkv^T  (D, 3D) lane-padded to 128
R_WO = D                   # rows [D, 2D)     : wo^T    (D, D)  in lanes [0, D)
R_W1 = 2 * D               # rows [2D, 3D)    : w1^T    (D, FF) lane-padded to 128
R_W2 = 3 * D               # rows [3D, 3D+128): w2^T row-padded (128, D) in lanes [0, D)
W2_ROWS = LANES
W_ROWS = R_W2 + W2_ROWS    # 224


def _layernorm(v, g, b, eps):
    mu = jnp.mean(v, axis=-1, keepdims=True)
    var = jnp.mean((v - mu) ** 2, axis=-1, keepdims=True)
    return (v - mu) * lax.rsqrt(var + eps) * g + b


def _gelu_exact(x):
    # F.gelu default = exact (erf-based) GELU
    return 0.5 * x * (1.0 + lax.erf(x * (2.0 ** -0.5)))


def transformer_kernel(x_ref, wbuf_ref, vecs_ref, out_ref):
    x = x_ref[...].astype(jnp.float32)          # (B*S, D) running activation

    for l in range(N_LAYERS):                   # fully unrolled (N_LAYERS=2)
        vl = vecs_ref[l]                        # (8, 128) packed biases / LN params
        bqkv = vl[0:1, :]                       # (1, 128) full-lane (scale pre-folded, padded w/ 0)
        bo = vl[1:2, :D]
        b1 = vl[2:3, :]                         # (1, 128) full-lane (padded w/ 0)
        b2 = vl[3:4, :D]
        g1 = vl[4:5, :D]
        be1 = vl[5:6, :D]
        g2 = vl[6:7, :D]
        be2 = vl[7:8, :D]

        # ---------------- self-attention block (pre-norm) ----------------
        h = _layernorm(x, g1, be1, EPS_LAYER)                        # (B*S, D)

        # QKV: [M,K]x[K,N] against the full-lane padded slab (lanes >= 3D are zero).
        wqkv = wbuf_ref[l, R_QKV:R_QKV + D, :]                       # (D, 128)
        qkv = jnp.dot(h, wqkv, preferred_element_type=jnp.float32) + bqkv   # (B*S, 128)
        qkv3 = qkv.reshape(B, S, LANES)                              # leading-dim split only

        # Batch the head slices: (B*H, S, HEAD_DIM) -> one batched contraction set.
        def _gather_heads(base):
            return jnp.stack(
                [qkv3[:, :, base + hh * HEAD_DIM: base + (hh + 1) * HEAD_DIM]
                 for hh in range(N_HEADS)], axis=1).reshape(B * N_HEADS, S, HEAD_DIM)

        q_bh = _gather_heads(0)          # scale already folded into wqkv/bqkv Q part
        k_bh = _gather_heads(D)
        v_bh = _gather_heads(2 * D)

        sc = jnp.einsum('bqe,bke->bqk', q_bh, k_bh,
                        preferred_element_type=jnp.float32)          # (B*H, S, S)
        sc = sc - jnp.max(sc, axis=-1, keepdims=True)
        p = jnp.exp(sc)
        p = p / jnp.sum(p, axis=-1, keepdims=True)                   # exact normalization
        ctx_bh = jnp.einsum('bqk,bke->bqe', p, v_bh,
                            preferred_element_type=jnp.float32)      # (B*H, S, HEAD_DIM)

        # Out-projection without a minor-dim concatenate: contract each head against
        # its (HEAD_DIM, D) block of wo^T, then sum the head partials (VPU adds).
        wo3 = wbuf_ref[l, R_WO:R_WO + D, :D].reshape(N_HEADS, HEAD_DIM, D)
        wo_b = jnp.broadcast_to(wo3[None], (B, N_HEADS, HEAD_DIM, D)
                                ).reshape(B * N_HEADS, HEAD_DIM, D)
        attn_parts = jnp.einsum('bqe,bed->bqd', ctx_bh, wo_b,
                                preferred_element_type=jnp.float32)  # (B*H, S, D)
        attn = attn_parts.reshape(B, N_HEADS, S, D).sum(axis=1).reshape(B * S, D) + bo
        x = x + attn                                                 # dropout = identity

        # ---------------- feed-forward block (pre-norm) ----------------
        h2 = _layernorm(x, g2, be2, EPS_LAYER)
        w1 = wbuf_ref[l, R_W1:R_W1 + D, :]                           # (D, 128), lanes >= FF are 0
        f = jnp.dot(h2, w1, preferred_element_type=jnp.float32) + b1 # (B*S, 128)
        f = _gelu_exact(f)                                           # gelu(0)=0 in padded lanes
        w2 = wbuf_ref[l, R_W2:R_W2 + W2_ROWS, :D]                    # (128, D), rows >= FF are 0
        x = x + jnp.dot(f, w2, preferred_element_type=jnp.float32) + b2

    gf = vecs_ref[N_LAYERS, 0:1, :D]
    bf = vecs_ref[N_LAYERS, 1:2, :D]
    out_ref[...] = _layernorm(x, gf, bf, EPS_FINAL).astype(out_ref.dtype)


def transformer_forward(x, params):
    (wqkv, bqkv, wo, bo, w1, b1, w2, b2, g1, be1, g2, be2, gf, bf) = params
    scale = HEAD_DIM ** -0.5

    # --- fold 1/sqrt(HEAD_DIM) into the Q columns of wqkv / bqkv (constant transform) ---
    wqkv_t = jnp.swapaxes(wqkv, 1, 2)                 # (L, D, 3D)  native [K, N]
    wqkv_t = wqkv_t.at[:, :, :D].multiply(scale)
    bqkv_s = bqkv.at[:, :D].multiply(scale)           # (L, 3D)
    wo_t = jnp.swapaxes(wo, 1, 2)                     # (L, D, D)
    w1_t = jnp.swapaxes(w1, 1, 2)                     # (L, D, FF)
    w2_t = jnp.swapaxes(w2, 1, 2)                     # (L, FF, D)
    w2_rp = jnp.pad(w2_t, ((0, 0), (0, W2_ROWS - FF), (0, 0)))   # (L, 128, D) zero rows

    def _pad_lanes3(a):
        return jnp.pad(a, ((0, 0), (0, 0), (0, LANES - a.shape[-1])))

    # --- one lane-dense weight slab per layer: (L, 224, 128) ---
    wbuf = jnp.concatenate(
        [_pad_lanes3(wqkv_t), _pad_lanes3(wo_t), _pad_lanes3(w1_t), _pad_lanes3(w2_rp)],
        axis=1)
    assert wbuf.shape == (N_LAYERS, W_ROWS, LANES)

    # --- packed per-layer vectors, padded to a full (8,128) tile each ---
    def _pad_lanes2(v):
        return jnp.pad(v, ((0, 0), (0, LANES - v.shape[-1])))

    vecs = jnp.stack([_pad_lanes2(bqkv_s), _pad_lanes2(bo), _pad_lanes2(b1),
                      _pad_lanes2(b2), _pad_lanes2(g1), _pad_lanes2(be1),
                      _pad_lanes2(g2), _pad_lanes2(be2)], axis=1)     # (L, 8, 128)
    final_slab = jnp.zeros((1, 8, LANES), jnp.float32)
    final_slab = final_slab.at[0, 0, :D].set(gf).at[0, 1, :D].set(bf)
    vecs = jnp.concatenate([vecs, final_slab], axis=0)                # (L+1, 8, 128)

    x2 = x.reshape(B * S, D)                          # flatten tokens for 2D matmuls

    vmem_spec = pl.BlockSpec(memory_space=pltpu.MemorySpace.VMEM)
    y = pl.pallas_call(
        transformer_kernel,
        out_shape=jax.ShapeDtypeStruct((B * S, D), x.dtype),
        in_specs=[vmem_spec] * 3,
        out_specs=vmem_spec,
        compiler_params=pltpu.CompilerParams(vmem_limit_bytes=32 * 1024 * 1024),
    )(x2, wbuf, vecs)
    return y.reshape(B, S, D)


def init_params(key):
    ks = jax.random.split(key, 8)
    std = 0.02
    wqkv = jax.random.normal(ks[0], (N_LAYERS, 3 * D, D), jnp.float32) * std
    bqkv = jax.random.normal(ks[1], (N_LAYERS, 3 * D), jnp.float32) * std
    wo = jax.random.normal(ks[2], (N_LAYERS, D, D), jnp.float32) * std
    bo = jax.random.normal(ks[3], (N_LAYERS, D), jnp.float32) * std
    w1 = jax.random.normal(ks[4], (N_LAYERS, FF, D), jnp.float32) * std
    b1 = jax.random.normal(ks[5], (N_LAYERS, FF), jnp.float32) * std
    w2 = jax.random.normal(ks[6], (N_LAYERS, D, FF), jnp.float32) * std
    b2 = jax.random.normal(ks[7], (N_LAYERS, D), jnp.float32) * std
    g1 = jnp.ones((N_LAYERS, D), jnp.float32)
    be1 = jnp.zeros((N_LAYERS, D), jnp.float32)
    g2 = jnp.ones((N_LAYERS, D), jnp.float32)
    be2 = jnp.zeros((N_LAYERS, D), jnp.float32)
    gf = jnp.ones((D,), jnp.float32)
    bf = jnp.zeros((D,), jnp.float32)
    return (wqkv, bqkv, wo, bo, w1, b1, w2, b2, g1, be1, g2, be2, gf, bf)


def reference(x, params):
    """Pure-JAX reference replicating the PyTorch pre-norm TransformerEncoder (eval mode)."""
    (wqkv, bqkv, wo, bo, w1, b1, w2, b2, g1, be1, g2, be2, gf, bf) = params
    x = x.astype(jnp.float32)
    for l in range(N_LAYERS):
        h = _layernorm(x, g1[l], be1[l], EPS_LAYER)
        qkv = h @ wqkv[l].T + bqkv[l]
        q, k, v = qkv[..., :D], qkv[..., D:2 * D], qkv[..., 2 * D:]
        qh = q.reshape(B, S, N_HEADS, HEAD_DIM).transpose(0, 2, 1, 3)
        kh = k.reshape(B, S, N_HEADS, HEAD_DIM).transpose(0, 2, 1, 3)
        vh = v.reshape(B, S, N_HEADS, HEAD_DIM).transpose(0, 2, 1, 3)
        sc = jnp.einsum('bhqe,bhke->bhqk', qh, kh) * (HEAD_DIM ** -0.5)
        p = jax.nn.softmax(sc, axis=-1)
        a = jnp.einsum('bhqk,bhke->bhqe', p, vh).transpose(0, 2, 1, 3).reshape(B, S, D)
        x = x + (a @ wo[l].T + bo[l])
        h2 = _layernorm(x, g2[l], be2[l], EPS_LAYER)
        f = _gelu_exact(h2 @ w1[l].T + b1[l])
        x = x + (f @ w2[l].T + b2[l])
    return _layernorm(x, gf, bf, EPS_FINAL)


if __name__ == "__main__":
    key = jax.random.PRNGKey(0)
    kx, kp = jax.random.split(key)
    x = jax.random.normal(kx, (B, S, D), jnp.float32)
    params = init_params(kp)

    out = transformer_forward(x, params)
    out = jax.block_until_ready(out)

    ref = reference(x, params)
    assert out.shape == (B, S, D)
    err = float(jnp.max(jnp.abs(out - ref)))
    assert jnp.allclose(out, ref, atol=1e-4, rtol=1e-4), f"max abs err {err}"
    print("KERNEL_OK")
</pallas_src>

<mosaic_0001>
module attributes {stable_mosaic.version = 11 : i64} {
  func.func @transformer_kernel(%arg0: memref<16x32xf32, #tpu.memory_space<vmem>>, %arg1: memref<2x224x128xf32, #tpu.memory_space<vmem>>, %arg2: memref<3x8x128xf32, #tpu.memory_space<vmem>>, %arg3: memref<16x32xf32, #tpu.memory_space<vmem>>) attributes {dimension_semantics = [], scalar_prefetch = 0 : i64, scratch_operands = 0 : i64, tpu.core_type = #tpu.core_type<tc>} {
    %c0 = arith.constant 0 : index
    %c0_0 = arith.constant 0 : index
    %0 = vector.load %arg0[%c0, %c0_0] : memref<16x32xf32, #tpu.memory_space<vmem>>, vector<16x32xf32>
    %c0_1 = arith.constant 0 : index
    %c0_2 = arith.constant 0 : index
    %c0_3 = arith.constant 0 : index
    %1 = vector.load %arg2[%c0_1, %c0_2, %c0_3] : memref<3x8x128xf32, #tpu.memory_space<vmem>>, vector<1x8x128xf32>
    %2 = vector.shape_cast %1 : vector<1x8x128xf32> to vector<8x128xf32>
    %3 = vector.extract_strided_slice %2 {offsets = [0, 0], sizes = [1, 128], strides = [1, 1]} : vector<8x128xf32> to vector<1x128xf32>
    %4 = vector.extract_strided_slice %2 {offsets = [1, 0], sizes = [1, 32], strides = [1, 1]} : vector<8x128xf32> to vector<1x32xf32>
    %5 = vector.extract_strided_slice %2 {offsets = [2, 0], sizes = [1, 128], strides = [1, 1]} : vector<8x128xf32> to vector<1x128xf32>
    %6 = vector.extract_strided_slice %2 {offsets = [3, 0], sizes = [1, 32], strides = [1, 1]} : vector<8x128xf32> to vector<1x32xf32>
    %7 = vector.extract_strided_slice %2 {offsets = [4, 0], sizes = [1, 32], strides = [1, 1]} : vector<8x128xf32> to vector<1x32xf32>
    %8 = vector.extract_strided_slice %2 {offsets = [5, 0], sizes = [1, 32], strides = [1, 1]} : vector<8x128xf32> to vector<1x32xf32>
    %9 = vector.extract_strided_slice %2 {offsets = [6, 0], sizes = [1, 32], strides = [1, 1]} : vector<8x128xf32> to vector<1x32xf32>
    %10 = vector.extract_strided_slice %2 {offsets = [7, 0], sizes = [1, 32], strides = [1, 1]} : vector<8x128xf32> to vector<1x32xf32>
    %cst = arith.constant dense<0.000000e+00> : vector<16xf32>
    %11 = vector.multi_reduction <add>, %0, %cst [1] : vector<16x32xf32> to vector<16xf32>
    %12 = vector.shape_cast %11 : vector<16xf32> to vector<16x1xf32>
    %cst_4 = arith.constant 3.200000e+01 : f32
    %13 = vector.broadcast %cst_4 : f32 to vector<16x1xf32>
    %14 = arith.divf %12, %13 : vector<16x1xf32>
    %15 = vector.broadcast %14 : vector<16x1xf32> to vector<16x32xf32>
    %16 = arith.subf %0, %15 : vector<16x32xf32>
    %17 = arith.mulf %16, %16 : vector<16x32xf32>
    %cst_5 = arith.constant dense<0.000000e+00> : vector<16xf32>
    %18 = vector.multi_reduction <add>, %17, %cst_5 [1] : vector<16x32xf32> to vector<16xf32>
    %19 = vector.shape_cast %18 : vector<16xf32> to vector<16x1xf32>
    %cst_6 = arith.constant 3.200000e+01 : f32
    %20 = vector.broadcast %cst_6 : f32 to vector<16x1xf32>
    %21 = arith.divf %19, %20 : vector<16x1xf32>
    %22 = vector.broadcast %14 : vector<16x1xf32> to vector<16x32xf32>
    %23 = arith.subf %0, %22 : vector<16x32xf32>
    %cst_7 = arith.constant 9.99999974E-6 : f32
    %24 = vector.broadcast %cst_7 : f32 to vector<16x1xf32>
    %25 = arith.addf %21, %24 : vector<16x1xf32>
    %26 = math.rsqrt %25 : vector<16x1xf32>
    %27 = vector.broadcast %26 : vector<16x1xf32> to vector<16x32xf32>
    %28 = arith.mulf %23, %27 : vector<16x32xf32>
    %29 = vector.broadcast %7 : vector<1x32xf32> to vector<16x32xf32>
    %30 = arith.mulf %28, %29 : vector<16x32xf32>
    %31 = vector.broadcast %8 : vector<1x32xf32> to vector<16x32xf32>
    %32 = arith.addf %30, %31 : vector<16x32xf32>
    %c0_8 = arith.constant 0 : index
    %c0_9 = arith.constant 0 : index
    %c0_10 = arith.constant 0 : index
    %33 = vector.load %arg1[%c0_8, %c0_9, %c0_10] : memref<2x224x128xf32, #tpu.memory_space<vmem>>, vector<1x32x128xf32>
    %34 = vector.shape_cast %33 : vector<1x32x128xf32> to vector<32x128xf32>
    %cst_11 = arith.constant dense<0.000000e+00> : vector<16x128xf32>
    %35 = tpu.matmul %32, %34, %cst_11 {dimension_numbers = #tpu.dot_dimension_numbers<[1], [0], [0], [1], [0, 0, 1, 1], [], []>} : vector<16x32xf32>, vector<32x128xf32>, vector<16x128xf32> -> vector<16x128xf32>
    %36 = vector.broadcast %3 : vector<1x128xf32> to vector<16x128xf32>
    %37 = arith.addf %35, %36 : vector<16x128xf32>
    %38 = vector.shape_cast %37 : vector<16x128xf32> to vector<2x8x128xf32>
    %39 = vector.extract_strided_slice %38 {offsets = [0, 0, 0], sizes = [2, 8, 8], strides = [1, 1, 1]} : vector<2x8x128xf32> to vector<2x8x8xf32>
    %40 = vector.extract_strided_slice %38 {offsets = [0, 0, 8], sizes = [2, 8, 8], strides = [1, 1, 1]} : vector<2x8x128xf32> to vector<2x8x8xf32>
    %41 = vector.extract_strided_slice %38 {offsets = [0, 0, 16], sizes = [2, 8, 8], strides = [1, 1, 1]} : vector<2x8x128xf32> to vector<2x8x8xf32>
    %42 = vector.extract_strided_slice %38 {offsets = [0, 0, 24], sizes = [2, 8, 8], strides = [1, 1, 1]} : vector<2x8x128xf32> to vector<2x8x8xf32>
    %43 = vector.shape_cast %39 : vector<2x8x8xf32> to vector<2x1x8x8xf32>
    %44 = vector.shape_cast %40 : vector<2x8x8xf32> to vector<2x1x8x8xf32>
    %45 = vector.shape_cast %41 : vector<2x8x8xf32> to vector<2x1x8x8xf32>
    %46 = vector.shape_cast %42 : vector<2x8x8xf32> to vector<2x1x8x8xf32>
    %47 = tpu.concatenate %43, %44, %45, %46 in 1 : vector<2x1x8x8xf32>, vector<2x1x8x8xf32>, vector<2x1x8x8xf32>, vector<2x1x8x8xf32> -> vector<2x4x8x8xf32>
    %48 = vector.shape_cast %47 : vector<2x4x8x8xf32> to vector<8x8x8xf32>
    %49 = vector.extract_strided_slice %38 {offsets = [0, 0, 32], sizes = [2, 8, 8], strides = [1, 1, 1]} : vector<2x8x128xf32> to vector<2x8x8xf32>
    %50 = vector.extract_strided_slice %38 {offsets = [0, 0, 40], sizes = [2, 8, 8], strides = [1, 1, 1]} : vector<2x8x128xf32> to vector<2x8x8xf32>
    %51 = vector.extract_strided_slice %38 {offsets = [0, 0, 48], sizes = [2, 8, 8], strides = [1, 1, 1]} : vector<2x8x128xf32> to vector<2x8x8xf32>
    %52 = vector.extract_strided_slice %38 {offsets = [0, 0, 56], sizes = [2, 8, 8], strides = [1, 1, 1]} : vector<2x8x128xf32> to vector<2x8x8xf32>
    %53 = vector.shape_cast %49 : vector<2x8x8xf32> to vector<2x1x8x8xf32>
    %54 = vector.shape_cast %50 : vector<2x8x8xf32> to vector<2x1x8x8xf32>
    %55 = vector.shape_cast %51 : vector<2x8x8xf32> to vector<2x1x8x8xf32>
    %56 = vector.shape_cast %52 : vector<2x8x8xf32> to vector<2x1x8x8xf32>
    %57 = tpu.concatenate %53, %54, %55, %56 in 1 : vector<2x1x8x8xf32>, vector<2x1x8x8xf32>, vector<2x1x8x8xf32>, vector<2x1x8x8xf32> -> vector<2x4x8x8xf32>
    %58 = vector.shape_cast %57 : vector<2x4x8x8xf32> to vector<8x8x8xf32>
    %59 = vector.extract_strided_slice %38 {offsets = [0, 0, 64], sizes = [2, 8, 8], strides = [1, 1, 1]} : vector<2x8x128xf32> to vector<2x8x8xf32>
    %60 = vector.extract_strided_slice %38 {offsets = [0, 0, 72], sizes = [2, 8, 8], strides = [1, 1, 1]} : vector<2x8x128xf32> to vector<2x8x8xf32>
    %61 = vector.extract_strided_slice %38 {offsets = [0, 0, 80], sizes = [2, 8, 8], strides = [1, 1, 1]} : vector<2x8x128xf32> to vector<2x8x8xf32>
    %62 = vector.extract_strided_slice %38 {offsets = [0, 0, 88], sizes = [2, 8, 8], strides = [1, 1, 1]} : vector<2x8x128xf32> to vector<2x8x8xf32>
    %63 = vector.shape_cast %59 : vector<2x8x8xf32> to vector<2x1x8x8xf32>
    %64 = vector.shape_cast %60 : vector<2x8x8xf32> to vector<2x1x8x8xf32>
    %65 = vector.shape_cast %61 : vector<2x8x8xf32> to vector<2x1x8x8xf32>
    %66 = vector.shape_cast %62 : vector<2x8x8xf32> to vector<2x1x8x8xf32>
    %67 = tpu.concatenate %63, %64, %65, %66 in 1 : vector<2x1x8x8xf32>, vector<2x1x8x8xf32>, vector<2x1x8x8xf32>, vector<2x1x8x8xf32> -> vector<2x4x8x8xf32>
    %68 = vector.shape_cast %67 : vector<2x4x8x8xf32> to vector<8x8x8xf32>
    "tpu.trace_start"() <{level = 10 : i32, message = "bqe,bke->bqk"}> : () -> ()
    %cst_12 = arith.constant dense<0.000000e+00> : vector<8x8x8xf32>
    %69 = tpu.matmul %48, %58, %cst_12 {dimension_numbers = #tpu.dot_dimension_numbers<[2], [2], [1], [1], [0, 0, 0, 1, 1, 1], [0], [0]>} : vector<8x8x8xf32>, vector<8x8x8xf32>, vector<8x8x8xf32> -> vector<8x8x8xf32>
    "tpu.trace_stop"() : () -> ()
    %cst_13 = arith.constant dense<0xFF800000> : vector<8x8xf32>
    %70 = vector.multi_reduction <maximumf>, %69, %cst_13 [2] : vector<8x8x8xf32> to vector<8x8xf32>
    %71 = vector.shape_cast %70 : vector<8x8xf32> to vector<8x8x1xf32>
    %72 = vector.broadcast %71 : vector<8x8x1xf32> to vector<8x8x8xf32>
    %73 = arith.subf %69, %72 : vector<8x8x8xf32>
    %74 = math.exp %73 : vector<8x8x8xf32>
    %cst_14 = arith.constant dense<0.000000e+00> : vector<8x8xf32>
    %75 = vector.multi_reduction <add>, %74, %cst_14 [2] : vector<8x8x8xf32> to vector<8x8xf32>
    %76 = vector.shape_cast %75 : vector<8x8xf32> to vector<8x8x1xf32>
    %77 = vector.broadcast %76 : vector<8x8x1xf32> to vector<8x8x8xf32>
    %78 = arith.divf %74, %77 : vector<8x8x8xf32>
    "tpu.trace_start"() <{level = 10 : i32, message = "bqk,bke->bqe"}> : () -> ()
    %cst_15 = arith.constant dense<0.000000e+00> : vector<8x8x8xf32>
    %79 = tpu.matmul %78, %68, %cst_15 {dimension_numbers = #tpu.dot_dimension_numbers<[2], [1], [1], [2], [0, 0, 0, 1, 1, 2], [0], [0]>} : vector<8x8x8xf32>, vector<8x8x8xf32>, vector<8x8x8xf32> -> vector<8x8x8xf32>
    "tpu.trace_stop"() : () -> ()
    %c0_16 = arith.constant 0 : index
    %c32 = arith.constant 32 : index
    %c0_17 = arith.constant 0 : index
    %80 = vector.load %arg1[%c0_16, %c32, %c0_17] : memref<2x224x128xf32, #tpu.memory_space<vmem>>, vector<1x32x32xf32>
    %81 = vector.shape_cast %80 : vector<1x32x32xf32> to vector<32x32xf32>
    %82 = vector.shape_cast %81 : vector<32x32xf32> to vector<4x8x32xf32>
    %83 = vector.shape_cast %82 : vector<4x8x32xf32> to vector<1x4x8x32xf32>
    %84 = vector.shape_cast %83 : vector<1x4x8x32xf32> to vector<1x4x8x32xf32>
    %85 = vector.broadcast %84 : vector<1x4x8x32xf32> to vector<2x4x8x32xf32>
    %86 = vector.shape_cast %85 : vector<2x4x8x32xf32> to vector<8x8x32xf32>
    "tpu.trace_start"() <{level = 10 : i32, message = "bqe,bed->bqd"}> : () -> ()
    %cst_18 = arith.constant dense<0.000000e+00> : vector<8x8x32xf32>
    %87 = tpu.matmul %79, %86, %cst_18 {dimension_numbers = #tpu.dot_dimension_numbers<[2], [1], [1], [2], [0, 0, 0, 1, 1, 2], [0], [0]>} : vector<8x8x8xf32>, vector<8x8x32xf32>, vector<8x8x32xf32> -> vector<8x8x32xf32>
    "tpu.trace_stop"() : () -> ()
    %88 = vector.shape_cast %87 : vector<8x8x32xf32> to vector<2x4x8x32xf32>
    %cst_19 = arith.constant dense<0.000000e+00> : vector<2x8x32xf32>
    %89 = vector.multi_reduction <add>, %88, %cst_19 [1] : vector<2x4x8x32xf32> to vector<2x8x32xf32>
    %90 = vector.shape_cast %89 : vector<2x8x32xf32> to vector<16x32xf32>
    %91 = vector.broadcast %4 : vector<1x32xf32> to vector<16x32xf32>
    %92 = arith.addf %90, %91 : vector<16x32xf32>
    %93 = arith.addf %0, %92 : vector<16x32xf32>
    %cst_20 = arith.constant dense<0.000000e+00> : vector<16xf32>
    %94 = vector.multi_reduction <add>, %93, %cst_20 [1] : vector<16x32xf32> to vector<16xf32>
    %95 = vector.shape_cast %94 : vector<16xf32> to vector<16x1xf32>
    %cst_21 = arith.constant 3.200000e+01 : f32
    %96 = vector.broadcast %cst_21 : f32 to vector<16x1xf32>
    %97 = arith.divf %95, %96 : vector<16x1xf32>
    %98 = vector.broadcast %97 : vector<16x1xf32> to vector<16x32xf32>
    %99 = arith.subf %93, %98 : vector<16x32xf32>
    %100 = arith.mulf %99, %99 : vector<16x32xf32>
    %cst_22 = arith.constant dense<0.000000e+00> : vector<16xf32>
    %101 = vector.multi_reduction <add>, %100, %cst_22 [1] : vector<16x32xf32> to vector<16xf32>
    %102 = vector.shape_cast %101 : vector<16xf32> to vector<16x1xf32>
    %cst_23 = arith.constant 3.200000e+01 : f32
    %103 = vector.broadcast %cst_23 : f32 to vector<16x1xf32>
    %104 = arith.divf %102, %103 : vector<16x1xf32>
    %105 = vector.broadcast %97 : vector<16x1xf32> to vector<16x32xf32>
    %106 = arith.subf %93, %105 : vector<16x32xf32>
    %cst_24 = arith.constant 9.99999974E-6 : f32
    %107 = vector.broadcast %cst_24 : f32 to vector<16x1xf32>
    %108 = arith.addf %104, %107 : vector<16x1xf32>
    %109 = math.rsqrt %108 : vector<16x1xf32>
    %110 = vector.broadcast %109 : vector<16x1xf32> to vector<16x32xf32>
    %111 = arith.mulf %106, %110 : vector<16x32xf32>
    %112 = vector.broadcast %9 : vector<1x32xf32> to vector<16x32xf32>
    %113 = arith.mulf %111, %112 : vector<16x32xf32>
    %114 = vector.broadcast %10 : vector<1x32xf32> to vector<16x32xf32>
    %115 = arith.addf %113, %114 : vector<16x32xf32>
    %c0_25 = arith.constant 0 : index
    %c64 = arith.constant 64 : index
    %c0_26 = arith.constant 0 : index
    %116 = vector.load %arg1[%c0_25, %c64, %c0_26] : memref<2x224x128xf32, #tpu.memory_space<vmem>>, vector<1x32x128xf32>
    %117 = vector.shape_cast %116 : vector<1x32x128xf32> to vector<32x128xf32>
    %cst_27 = arith.constant dense<0.000000e+00> : vector<16x128xf32>
    %118 = tpu.matmul %115, %117, %cst_27 {dimension_numbers = #tpu.dot_dimension_numbers<[1], [0], [0], [1], [0, 0, 1, 1], [], []>} : vector<16x32xf32>, vector<32x128xf32>, vector<16x128xf32> -> vector<16x128xf32>
    %119 = vector.broadcast %5 : vector<1x128xf32> to vector<16x128xf32>
    %120 = arith.addf %118, %119 : vector<16x128xf32>
    %cst_28 = arith.constant 5.000000e-01 : f32
    %121 = vector.broadcast %cst_28 : f32 to vector<16x128xf32>
    %122 = arith.mulf %121, %120 : vector<16x128xf32>
    %cst_29 = arith.constant 0.707106769 : f32
    %123 = vector.broadcast %cst_29 : f32 to vector<16x128xf32>
    %124 = arith.mulf %120, %123 : vector<16x128xf32>
    %125 = math.erf %124 : vector<16x128xf32>
    %cst_30 = arith.constant 1.000000e+00 : f32
    %126 = vector.broadcast %cst_30 : f32 to vector<16x128xf32>
    %127 = arith.addf %126, %125 : vector<16x128xf32>
    %128 = arith.mulf %122, %127 : vector<16x128xf32>
    %c0_31 = arith.constant 0 : index
    %c96 = arith.constant 96 : index
    %c0_32 = arith.constant 0 : index
    %129 = vector.load %arg1[%c0_31, %c96, %c0_32] : memref<2x224x128xf32, #tpu.memory_space<vmem>>, vector<1x128x32xf32>
    %130 = vector.shape_cast %129 : vector<1x128x32xf32> to vector<128x32xf32>
    %cst_33 = arith.constant dense<0.000000e+00> : vector<16x32xf32>
    %131 = tpu.matmul %128, %130, %cst_33 {dimension_numbers = #tpu.dot_dimension_numbers<[1], [0], [0], [1], [0, 0, 1, 1], [], []>} : vector<16x128xf32>, vector<128x32xf32>, vector<16x32xf32> -> vector<16x32xf32>
    %132 = arith.addf %93, %131 : vector<16x32xf32>
    %133 = vector.broadcast %6 : vector<1x32xf32> to vector<16x32xf32>
    %134 = arith.addf %132, %133 : vector<16x32xf32>
    %c1 = arith.constant 1 : index
    %c0_34 = arith.constant 0 : index
    %c0_35 = arith.constant 0 : index
    %135 = vector.load %arg2[%c1, %c0_34, %c0_35] : memref<3x8x128xf32, #tpu.memory_space<vmem>>, vector<1x8x128xf32>
    %136 = vector.shape_cast %135 : vector<1x8x128xf32> to vector<8x128xf32>
    %137 = vector.extract_strided_slice %136 {offsets = [0, 0], sizes = [1, 128], strides = [1, 1]} : vector<8x128xf32> to vector<1x128xf32>
    %138 = vector.extract_strided_slice %136 {offsets = [1, 0], sizes = [1, 32], strides = [1, 1]} : vector<8x128xf32> to vector<1x32xf32>
    %139 = vector.extract_strided_slice %136 {offsets = [2, 0], sizes = [1, 128], strides = [1, 1]} : vector<8x128xf32> to vector<1x128xf32>
    %140 = vector.extract_strided_slice %136 {offsets = [3, 0], sizes = [1, 32], strides = [1, 1]} : vector<8x128xf32> to vector<1x32xf32>
    %141 = vector.extract_strided_slice %136 {offsets = [4, 0], sizes = [1, 32], strides = [1, 1]} : vector<8x128xf32> to vector<1x32xf32>
    %142 = vector.extract_strided_slice %136 {offsets = [5, 0], sizes = [1, 32], strides = [1, 1]} : vector<8x128xf32> to vector<1x32xf32>
    %143 = vector.extract_strided_slice %136 {offsets = [6, 0], sizes = [1, 32], strides = [1, 1]} : vector<8x128xf32> to vector<1x32xf32>
    %144 = vector.extract_strided_slice %136 {offsets = [7, 0], sizes = [1, 32], strides = [1, 1]} : vector<8x128xf32> to vector<1x32xf32>
    %cst_36 = arith.constant dense<0.000000e+00> : vector<16xf32>
    %145 = vector.multi_reduction <add>, %134, %cst_36 [1] : vector<16x32xf32> to vector<16xf32>
    %146 = vector.shape_cast %145 : vector<16xf32> to vector<16x1xf32>
    %cst_37 = arith.constant 3.200000e+01 : f32
    %147 = vector.broadcast %cst_37 : f32 to vector<16x1xf32>
    %148 = arith.divf %146, %147 : vector<16x1xf32>
    %149 = vector.broadcast %148 : vector<16x1xf32> to vector<16x32xf32>
    %150 = arith.subf %134, %149 : vector<16x32xf32>
    %151 = arith.mulf %150, %150 : vector<16x32xf32>
    %cst_38 = arith.constant dense<0.000000e+00> : vector<16xf32>
    %152 = vector.multi_reduction <add>, %151, %cst_38 [1] : vector<16x32xf32> to vector<16xf32>
    %153 = vector.shape_cast %152 : vector<16xf32> to vector<16x1xf32>
    %cst_39 = arith.constant 3.200000e+01 : f32
    %154 = vector.broadcast %cst_39 : f32 to vector<16x1xf32>
    %155 = arith.divf %153, %154 : vector<16x1xf32>
    %156 = vector.broadcast %148 : vector<16x1xf32> to vector<16x32xf32>
    %157 = arith.subf %134, %156 : vector<16x32xf32>
    %cst_40 = arith.constant 9.99999974E-6 : f32
    %158 = vector.broadcast %cst_40 : f32 to vector<16x1xf32>
    %159 = arith.addf %155, %158 : vector<16x1xf32>
    %160 = math.rsqrt %159 : vector<16x1xf32>
    %161 = vector.broadcast %160 : vector<16x1xf32> to vector<16x32xf32>
    %162 = arith.mulf %157, %161 : vector<16x32xf32>
    %163 = vector.broadcast %141 : vector<1x32xf32> to vector<16x32xf32>
    %164 = arith.mulf %162, %163 : vector<16x32xf32>
    %165 = vector.broadcast %142 : vector<1x32xf32> to vector<16x32xf32>
    %166 = arith.addf %164, %165 : vector<16x32xf32>
    %c1_41 = arith.constant 1 : index
    %c0_42 = arith.constant 0 : index
    %c0_43 = arith.constant 0 : index
    %167 = vector.load %arg1[%c1_41, %c0_42, %c0_43] : memref<2x224x128xf32, #tpu.memory_space<vmem>>, vector<1x32x128xf32>
    %168 = vector.shape_cast %167 : vector<1x32x128xf32> to vector<32x128xf32>
    %cst_44 = arith.constant dense<0.000000e+00> : vector<16x128xf32>
    %169 = tpu.matmul %166, %168, %cst_44 {dimension_numbers = #tpu.dot_dimension_numbers<[1], [0], [0], [1], [0, 0, 1, 1], [], []>} : vector<16x32xf32>, vector<32x128xf32>, vector<16x128xf32> -> vector<16x128xf32>
    %170 = vector.broadcast %137 : vector<1x128xf32> to vector<16x128xf32>
    %171 = arith.addf %169, %170 : vector<16x128xf32>
    %172 = vector.shape_cast %171 : vector<16x128xf32> to vector<2x8x128xf32>
    %173 = vector.extract_strided_slice %172 {offsets = [0, 0, 0], sizes = [2, 8, 8], strides = [1, 1, 1]} : vector<2x8x128xf32> to vector<2x8x8xf32>
    %174 = vector.extract_strided_slice %172 {offsets = [0, 0, 8], sizes = [2, 8, 8], strides = [1, 1, 1]} : vector<2x8x128xf32> to vector<2x8x8xf32>
    %175 = vector.extract_strided_slice %172 {offsets = [0, 0, 16], sizes = [2, 8, 8], strides = [1, 1, 1]} : vector<2x8x128xf32> to vector<2x8x8xf32>
    %176 = vector.extract_strided_slice %172 {offsets = [0, 0, 24], sizes = [2, 8, 8], strides = [1, 1, 1]} : vector<2x8x128xf32> to vector<2x8x8xf32>
    %177 = vector.shape_cast %173 : vector<2x8x8xf32> to vector<2x1x8x8xf32>
    %178 = vector.shape_cast %174 : vector<2x8x8xf32> to vector<2x1x8x8xf32>
    %179 = vector.shape_cast %175 : vector<2x8x8xf32> to vector<2x1x8x8xf32>
    %180 = vector.shape_cast %176 : vector<2x8x8xf32> to vector<2x1x8x8xf32>
    %181 = tpu.concatenate %177, %178, %179, %180 in 1 : vector<2x1x8x8xf32>, vector<2x1x8x8xf32>, vector<2x1x8x8xf32>, vector<2x1x8x8xf32> -> vector<2x4x8x8xf32>
    %182 = vector.shape_cast %181 : vector<2x4x8x8xf32> to vector<8x8x8xf32>
    %183 = vector.extract_strided_slice %172 {offsets = [0, 0, 32], sizes = [2, 8, 8], strides = [1, 1, 1]} : vector<2x8x128xf32> to vector<2x8x8xf32>
    %184 = vector.extract_strided_slice %172 {offsets = [0, 0, 40], sizes = [2, 8, 8], strides = [1, 1, 1]} : vector<2x8x128xf32> to vector<2x8x8xf32>
    %185 = vector.extract_strided_slice %172 {offsets = [0, 0, 48], sizes = [2, 8, 8], strides = [1, 1, 1]} : vector<2x8x128xf32> to vector<2x8x8xf32>
    %186 = vector.extract_strided_slice %172 {offsets = [0, 0, 56], sizes = [2, 8, 8], strides = [1, 1, 1]} : vector<2x8x128xf32> to vector<2x8x8xf32>
    %187 = vector.shape_cast %183 : vector<2x8x8xf32> to vector<2x1x8x8xf32>
    %188 = vector.shape_cast %184 : vector<2x8x8xf32> to vector<2x1x8x8xf32>
    %189 = vector.shape_cast %185 : vector<2x8x8xf32> to vector<2x1x8x8xf32>
    %190 = vector.shape_cast %186 : vector<2x8x8xf32> to vector<2x1x8x8xf32>
    %191 = tpu.concatenate %187, %188, %189, %190 in 1 : vector<2x1x8x8xf32>, vector<2x1x8x8xf32>, vector<2x1x8x8xf32>, vector<2x1x8x8xf32> -> vector<2x4x8x8xf32>
    %192 = vector.shape_cast %191 : vector<2x4x8x8xf32> to vector<8x8x8xf32>
    %193 = vector.extract_strided_slice %172 {offsets = [0, 0, 64], sizes = [2, 8, 8], strides = [1, 1, 1]} : vector<2x8x128xf32> to vector<2x8x8xf32>
    %194 = vector.extract_strided_slice %172 {offsets = [0, 0, 72], sizes = [2, 8, 8], strides = [1, 1, 1]} : vector<2x8x128xf32> to vector<2x8x8xf32>
    %195 = vector.extract_strided_slice %172 {offsets = [0, 0, 80], sizes = [2, 8, 8], strides = [1, 1, 1]} : vector<2x8x128xf32> to vector<2x8x8xf32>
    %196 = vector.extract_strided_slice %172 {offsets = [0, 0, 88], sizes = [2, 8, 8], strides = [1, 1, 1]} : vector<2x8x128xf32> to vector<2x8x8xf32>
    %197 = vector.shape_cast %193 : vector<2x8x8xf32> to vector<2x1x8x8xf32>
    %198 = vector.shape_cast %194 : vector<2x8x8xf32> to vector<2x1x8x8xf32>
    %199 = vector.shape_cast %195 : vector<2x8x8xf32> to vector<2x1x8x8xf32>
    %200 = vector.shape_cast %196 : vector<2x8x8xf32> to vector<2x1x8x8xf32>
    %201 = tpu.concatenate %197, %198, %199, %200 in 1 : vector<2x1x8x8xf32>, vector<2x1x8x8xf32>, vector<2x1x8x8xf32>, vector<2x1x8x8xf32> -> vector<2x4x8x8xf32>
    %202 = vector.shape_cast %201 : vector<2x4x8x8xf32> to vector<8x8x8xf32>
    "tpu.trace_start"() <{level = 10 : i32, message = "bqe,bke->bqk"}> : () -> ()
    %cst_45 = arith.constant dense<0.000000e+00> : vector<8x8x8xf32>
    %203 = tpu.matmul %182, %192, %cst_45 {dimension_numbers = #tpu.dot_dimension_numbers<[2], [2], [1], [1], [0, 0, 0, 1, 1, 1], [0], [0]>} : vector<8x8x8xf32>, vector<8x8x8xf32>, vector<8x8x8xf32> -> vector<8x8x8xf32>
    "tpu.trace_stop"() : () -> ()
    %cst_46 = arith.constant dense<0xFF800000> : vector<8x8xf32>
    %204 = vector.multi_reduction <maximumf>, %203, %cst_46 [2] : vector<8x8x8xf32> to vector<8x8xf32>
    %205 = vector.shape_cast %204 : vector<8x8xf32> to vector<8x8x1xf32>
    %206 = vector.broadcast %205 : vector<8x8x1xf32> to vector<8x8x8xf32>
    %207 = arith.subf %203, %206 : vector<8x8x8xf32>
    %208 = math.exp %207 : vector<8x8x8xf32>
    %cst_47 = arith.constant dense<0.000000e+00> : vector<8x8xf32>
    %209 = vector.multi_reduction <add>, %208, %cst_47 [2] : vector<8x8x8xf32> to vector<8x8xf32>
    %210 = vector.shape_cast %209 : vector<8x8xf32> to vector<8x8x1xf32>
    %211 = vector.broadcast %210 : vector<8x8x1xf32> to vector<8x8x8xf32>
    %212 = arith.divf %208, %211 : vector<8x8x8xf32>
    "tpu.trace_start"() <{level = 10 : i32, message = "bqk,bke->bqe"}> : () -> ()
    %cst_48 = arith.constant dense<0.000000e+00> : vector<8x8x8xf32>
    %213 = tpu.matmul %212, %202, %cst_48 {dimension_numbers = #tpu.dot_dimension_numbers<[2], [1], [1], [2], [0, 0, 0, 1, 1, 2], [0], [0]>} : vector<8x8x8xf32>, vector<8x8x8xf32>, vector<8x8x8xf32> -> vector<8x8x8xf32>
    "tpu.trace_stop"() : () -> ()
    %c1_49 = arith.constant 1 : index
    %c32_50 = arith.constant 32 : index
    %c0_51 = arith.constant 0 : index
    %214 = vector.load %arg1[%c1_49, %c32_50, %c0_51] : memref<2x224x128xf32, #tpu.memory_space<vmem>>, vector<1x32x32xf32>
    %215 = vector.shape_cast %214 : vector<1x32x32xf32> to vector<32x32xf32>
    %216 = vector.shape_cast %215 : vector<32x32xf32> to vector<4x8x32xf32>
    %217 = vector.shape_cast %216 : vector<4x8x32xf32> to vector<1x4x8x32xf32>
    %218 = vector.shape_cast %217 : vector<1x4x8x32xf32> to vector<1x4x8x32xf32>
    %219 = vector.broadcast %218 : vector<1x4x8x32xf32> to vector<2x4x8x32xf32>
    %220 = vector.shape_cast %219 : vector<2x4x8x32xf32> to vector<8x8x32xf32>
    "tpu.trace_start"() <{level = 10 : i32, message = "bqe,bed->bqd"}> : () -> ()
    %cst_52 = arith.constant dense<0.000000e+00> : vector<8x8x32xf32>
    %221 = tpu.matmul %213, %220, %cst_52 {dimension_numbers = #tpu.dot_dimension_numbers<[2], [1], [1], [2], [0, 0, 0, 1, 1, 2], [0], [0]>} : vector<8x8x8xf32>, vector<8x8x32xf32>, vector<8x8x32xf32> -> vector<8x8x32xf32>
    "tpu.trace_stop"() : () -> ()
    %222 = vector.shape_cast %221 : vector<8x8x32xf32> to vector<2x4x8x32xf32>
    %cst_53 = arith.constant dense<0.000000e+00> : vector<2x8x32xf32>
    %223 = vector.multi_reduction <add>, %222, %cst_53 [1] : vector<2x4x8x32xf32> to vector<2x8x32xf32>
    %224 = vector.shape_cast %223 : vector<2x8x32xf32> to vector<16x32xf32>
    %225 = vector.broadcast %138 : vector<1x32xf32> to vector<16x32xf32>
    %226 = arith.addf %224, %225 : vector<16x32xf32>
    %227 = arith.addf %134, %226 : vector<16x32xf32>
    %cst_54 = arith.constant dense<0.000000e+00> : vector<16xf32>
    %228 = vector.multi_reduction <add>, %227, %cst_54 [1] : vector<16x32xf32> to vector<16xf32>
    %229 = vector.shape_cast %228 : vector<16xf32> to vector<16x1xf32>
    %cst_55 = arith.constant 3.200000e+01 : f32
    %230 = vector.broadcast %cst_55 : f32 to vector<16x1xf32>
    %231 = arith.divf %229, %230 : vector<16x1xf32>
    %232 = vector.broadcast %231 : vector<16x1xf32> to vector<16x32xf32>
    %233 = arith.subf %227, %232 : vector<16x32xf32>
    %234 = arith.mulf %233, %233 : vector<16x32xf32>
    %cst_56 = arith.constant dense<0.000000e+00> : vector<16xf32>
    %235 = vector.multi_reduction <add>, %234, %cst_56 [1] : vector<16x32xf32> to vector<16xf32>
    %236 = vector.shape_cast %235 : vector<16xf32> to vector<16x1xf32>
    %cst_57 = arith.constant 3.200000e+01 : f32
    %237 = vector.broadcast %cst_57 : f32 to vector<16x1xf32>
    %238 = arith.divf %236, %237 : vector<16x1xf32>
    %239 = vector.broadcast %231 : vector<16x1xf32> to vector<16x32xf32>
    %240 = arith.subf %227, %239 : vector<16x32xf32>
    %cst_58 = arith.constant 9.99999974E-6 : f32
    %241 = vector.broadcast %cst_58 : f32 to vector<16x1xf32>
    %242 = arith.addf %238, %241 : vector<16x1xf32>
    %243 = math.rsqrt %242 : vector<16x1xf32>
    %244 = vector.broadcast %243 : vector<16x1xf32> to vector<16x32xf32>
    %245 = arith.mulf %240, %244 : vector<16x32xf32>
    %246 = vector.broadcast %143 : vector<1x32xf32> to vector<16x32xf32>
    %247 = arith.mulf %245, %246 : vector<16x32xf32>
    %248 = vector.broadcast %144 : vector<1x32xf32> to vector<16x32xf32>
    %249 = arith.addf %247, %248 : vector<16x32xf32>
    %c1_59 = arith.constant 1 : index
    %c64_60 = arith.constant 64 : index
    %c0_61 = arith.constant 0 : index
    %250 = vector.load %arg1[%c1_59, %c64_60, %c0_61] : memref<2x224x128xf32, #tpu.memory_space<vmem>>, vector<1x32x128xf32>
    %251 = vector.shape_cast %250 : vector<1x32x128xf32> to vector<32x128xf32>
    %cst_62 = arith.constant dense<0.000000e+00> : vector<16x128xf32>
    %252 = tpu.matmul %249, %251, %cst_62 {dimension_numbers = #tpu.dot_dimension_numbers<[1], [0], [0], [1], [0, 0, 1, 1], [], []>} : vector<16x32xf32>, vector<32x128xf32>, vector<16x128xf32> -> vector<16x128xf32>
    %253 = vector.broadcast %139 : vector<1x128xf32> to vector<16x128xf32>
    %254 = arith.addf %252, %253 : vector<16x128xf32>
    %cst_63 = arith.constant 5.000000e-01 : f32
    %255 = vector.broadcast %cst_63 : f32 to vector<16x128xf32>
    %256 = arith.mulf %255, %254 : vector<16x128xf32>
    %cst_64 = arith.constant 0.707106769 : f32
    %257 = vector.broadcast %cst_64 : f32 to vector<16x128xf32>
    %258 = arith.mulf %254, %257 : vector<16x128xf32>
    %259 = math.erf %258 : vector<16x128xf32>
    %cst_65 = arith.constant 1.000000e+00 : f32
    %260 = vector.broadcast %cst_65 : f32 to vector<16x128xf32>
    %261 = arith.addf %260, %259 : vector<16x128xf32>
    %262 = arith.mulf %256, %261 : vector<16x128xf32>
    %c1_66 = arith.constant 1 : index
    %c96_67 = arith.constant 96 : index
    %c0_68 = arith.constant 0 : index
    %263 = vector.load %arg1[%c1_66, %c96_67, %c0_68] : memref<2x224x128xf32, #tpu.memory_space<vmem>>, vector<1x128x32xf32>
    %264 = vector.shape_cast %263 : vector<1x128x32xf32> to vector<128x32xf32>
    %cst_69 = arith.constant dense<0.000000e+00> : vector<16x32xf32>
    %265 = tpu.matmul %262, %264, %cst_69 {dimension_numbers = #tpu.dot_dimension_numbers<[1], [0], [0], [1], [0, 0, 1, 1], [], []>} : vector<16x128xf32>, vector<128x32xf32>, vector<16x32xf32> -> vector<16x32xf32>
    %266 = arith.addf %227, %265 : vector<16x32xf32>
    %267 = vector.broadcast %140 : vector<1x32xf32> to vector<16x32xf32>
    %268 = arith.addf %266, %267 : vector<16x32xf32>
    %c2 = arith.constant 2 : index
    %c0_70 = arith.constant 0 : index
    %c0_71 = arith.constant 0 : index
    %269 = vector.load %arg2[%c2, %c0_70, %c0_71] : memref<3x8x128xf32, #tpu.memory_space<vmem>>, vector<1x1x32xf32>
    %270 = vector.shape_cast %269 : vector<1x1x32xf32> to vector<1x32xf32>
    %c2_72 = arith.constant 2 : index
    %c1_73 = arith.constant 1 : index
    %c0_74 = arith.constant 0 : index
    %271 = vector.load %arg2[%c2_72, %c1_73, %c0_74] : memref<3x8x128xf32, #tpu.memory_space<vmem>>, vector<1x1x32xf32>
    %272 = vector.shape_cast %271 : vector<1x1x32xf32> to vector<1x32xf32>
    %cst_75 = arith.constant dense<0.000000e+00> : vector<16xf32>
    %273 = vector.multi_reduction <add>, %268, %cst_75 [1] : vector<16x32xf32> to vector<16xf32>
    %274 = vector.shape_cast %273 : vector<16xf32> to vector<16x1xf32>
    %cst_76 = arith.constant 3.200000e+01 : f32
    %275 = vector.broadcast %cst_76 : f32 to vector<16x1xf32>
    %276 = arith.divf %274, %275 : vector<16x1xf32>
    %277 = vector.broadcast %276 : vector<16x1xf32> to vector<16x32xf32>
    %278 = arith.subf %268, %277 : vector<16x32xf32>
    %279 = arith.mulf %278, %278 : vector<16x32xf32>
    %cst_77 = arith.constant dense<0.000000e+00> : vector<16xf32>
    %280 = vector.multi_reduction <add>, %279, %cst_77 [1] : vector<16x32xf32> to vector<16xf32>
    %281 = vector.shape_cast %280 : vector<16xf32> to vector<16x1xf32>
    %cst_78 = arith.constant 3.200000e+01 : f32
    %282 = vector.broadcast %cst_78 : f32 to vector<16x1xf32>
    %283 = arith.divf %281, %282 : vector<16x1xf32>
    %284 = vector.broadcast %276 : vector<16x1xf32> to vector<16x32xf32>
    %285 = arith.subf %268, %284 : vector<16x32xf32>
    %cst_79 = arith.constant 9.99999997E-7 : f32
    %286 = vector.broadcast %cst_79 : f32 to vector<16x1xf32>
    %287 = arith.addf %283, %286 : vector<16x1xf32>
    %288 = math.rsqrt %287 : vector<16x1xf32>
    %289 = vector.broadcast %288 : vector<16x1xf32> to vector<16x32xf32>
    %290 = arith.mulf %285, %289 : vector<16x32xf32>
    %291 = vector.broadcast %270 : vector<1x32xf32> to vector<16x32xf32>
    %292 = arith.mulf %290, %291 : vector<16x32xf32>
    %293 = vector.broadcast %272 : vector<1x32xf32> to vector<16x32xf32>
    %294 = arith.addf %292, %293 : vector<16x32xf32>
    %c0_80 = arith.constant 0 : index
    %c0_81 = arith.constant 0 : index
    %295 = vector.load %arg3[%c0_80, %c0_81] : memref<16x32xf32, #tpu.memory_space<vmem>>, vector<16x32xf32>
    tpu.vector_store %arg3[%c0_80, %c0_81], %294 {strides = array<i32>} : memref<16x32xf32, #tpu.memory_space<vmem>>, vector<16x32xf32>,
    return
  }
}

</mosaic_0001>

<llo_original>
// kernel: tpu_custom_call.1
$region0: #{tpu_custom_call.1}
  #allocation0 [shape = 'u32[]', space=smem, size = 0x4, offset = 0x4, fixed_abs, tag = 'smem constant byte address 0x4 - core index']
  #allocation1 [shape = 'u32[72,128]{1,0:T(1,128)}', space=vmem, size = 0x9000, scoped, tag = 'internal scratch']
  %s0 = inlined_call_operand.hbm [shape: f32[16,32], index: 0, kind: input, shape index: {}]
  %s1 = inlined_call_operand.hbm [shape: f32[2,224,128], index: 1, kind: input, shape index: {}]
  %s2 = inlined_call_operand.hbm [shape: f32[3,8,128], index: 2, kind: input, shape index: {}]
  %s3 = inlined_call_operand.hbm [shape: f32[16,32], index: 3, kind: output, shape index: {}]
  %s4 = sld [smem:[#allocation0]]
  $region34: #{tpu_custom_call.1} parent=0
    _
  %s6 = ssub.s32 1, %s4
  %s7 = scalar_select 0, %s6, %s4
  $region1: #{tpu_custom_call.1} parent=0
    #allocation2 [shape = 'u8[8192]{0}', space=vmem, size = 0x2000, scoped, tag = 'input window, operand 0, single buffered']
    #allocation3 [shape = 's32[1]{0}', space=sflag, size = 0x4, scoped, tag = 'scoped memory for tpu_custom_call.1']
    #allocation4 [shape = 's32[1]{0}', space=sflag, size = 0x4, scoped, tag = 'scoped memory for tpu_custom_call.1']
    #allocation5 [shape = 'u8[229376]{0}', space=vmem, size = 0x38000, scoped, tag = 'input window, operand 1, single buffered']
    #allocation6 [shape = 's32[1]{0}', space=sflag, size = 0x4, scoped, tag = 'scoped memory for tpu_custom_call.1']
    #allocation7 [shape = 'u8[12288]{0}', space=vmem, size = 0x3000, scoped, tag = 'input window, operand 2, single buffered']
    #allocation8 [shape = 'u8[8192]{0}', space=vmem, size = 0x2000, scoped, tag = 'output window, operand 0, single buffered']
    %8 = vsyncpa [#allocation3], 0
    %9 = vsyncpa [#allocation6], 0
    %10 = vsyncpa [#allocation4], 0
    // Predicated region
    $region2: #{tpu_custom_call.1} parent=1 // pred_check
      _
    $region3: #{tpu_custom_call.1} parent=1 // pred_check_branch
      %12 = sbr.rel (0) target = $region5
    $region4: #{tpu_custom_call.1} parent=1 // pred_region
      %14 = vsyncadd [#allocation3], 0
      %s15 = sshll.u32 %s0, 4
      %s16 = int_to_ptr.hbm [resolvable:$true] %s15
      %s17 = sshll.u32 [#allocation2], 4
      %s18 = int_to_ptr.vmem [resolvable:$true] %s17
      %23 = dma.hbm_to_vmem [thread:$0]  %s16, 256, %s18, [#allocation3], 128, 128, 8
    $region5: #{tpu_custom_call.1} parent=1 // pred_fallthru
      _
    // Predicated region
    $region6: #{tpu_custom_call.1} parent=1 // pred_check
      _
    $region7: #{tpu_custom_call.1} parent=1 // pred_check_branch
      %25 = sbr.rel (0) target = $region9
    $region8: #{tpu_custom_call.1} parent=1 // pred_region
      %27 = vsyncadd [#allocation6], 0
      %s28 = sshll.u32 %s1, 4
      %s29 = int_to_ptr.hbm [resolvable:$true] %s28
      %s30 = sshll.u32 [#allocation5], 4
      %s31 = int_to_ptr.vmem [resolvable:$true] %s30
      %36 = dma.hbm_to_vmem [thread:$0]  %s29, 7168, %s31, [#allocation6], 128, 128, 8
    $region9: #{tpu_custom_call.1} parent=1 // pred_fallthru
      _
    // Predicated region
    $region10: #{tpu_custom_call.1} parent=1 // pred_check
      _
    $region11: #{tpu_custom_call.1} parent=1 // pred_check_branch
      %38 = sbr.rel (0) target = $region13
    $region12: #{tpu_custom_call.1} parent=1 // pred_region
      %40 = vsyncadd [#allocation6], 0
      %s41 = sshll.u32 %s2, 4
      %s42 = int_to_ptr.hbm [resolvable:$true] %s41
      %s43 = sshll.u32 [#allocation7], 4
      %s44 = int_to_ptr.vmem [resolvable:$true] %s43
      %49 = dma.hbm_to_vmem [thread:$0]  %s42, 384, %s44, [#allocation6], 128, 128, 8
    $region13: #{tpu_custom_call.1} parent=1 // pred_fallthru
      _
    // Predicated region
    $region14: #{tpu_custom_call.1} parent=1 // pred_check
      _
    $region15: #{tpu_custom_call.1} parent=1 // pred_check_branch
      %51 = sbr.rel (0) target = $region17
    $region16: #{tpu_custom_call.1} parent=1 // pred_region
      %53 = dma.done [#allocation3], 256
    $region17: #{tpu_custom_call.1} parent=1 // pred_fallthru
      _
    // Predicated region
    $region18: #{tpu_custom_call.1} parent=1 // pred_check
      _
    $region19: #{tpu_custom_call.1} parent=1 // pred_check_branch
      %55 = sbr.rel (0) target = $region21
    $region20: #{tpu_custom_call.1} parent=1 // pred_region
      %57 = dma.done [#allocation6], 7168
    $region21: #{tpu_custom_call.1} parent=1 // pred_fallthru
      _
    // Predicated region
    $region22: #{tpu_custom_call.1} parent=1 // pred_check
      _
    $region23: #{tpu_custom_call.1} parent=1 // pred_check_branch
      %59 = sbr.rel (0) target = $region25
    $region24: #{tpu_custom_call.1} parent=1 // pred_region
      %61 = dma.done [#allocation6], 384
    $region25: #{tpu_custom_call.1} parent=1 // pred_fallthru
      _
    %v62 = vld [vmem:[#allocation2] sm:$0xff]
    %v63 = vld [vmem:[#allocation2 + $0x8] sm:$0xff]
    %v64 = vld [vmem:[#allocation7] sm:$0xff]
    %vm65 = vcmask 261120
    %v66 = vsel %vm65, %v62, 0.0
    %67 = vadd.xlane.f32.xlu0 %v66
    %v68 = vpop.xlane.xlu0 %67
    %v69 = vsel %vm65, %v63, 0.0
    %70 = vadd.xlane.f32.xlu0 %v69
    %v71 = vpop.xlane.xlu0 %70
    %v72 = vrcp.pop 32.0
    %v73 = vmul.f32 32.0, %v72
    %v74 = vsub.f32 1.0, %v73
    %v75 = vmul.f32 %v72, %v74
    %v76 = vadd.f32 %v72, %v75
    %vm77 = vweird.f32 %v72
    %v78 = vsel %vm77, %v72, %v76
    %v79 = vmul.f32 %v68, %v78
    %v80 = vmul.f32 %v71, %v78
    %v81 = vsub.f32 %v62, %v79
    %v82 = vsub.f32 %v63, %v80
    %v83 = vmul.f32 %v81, %v81
    %v84 = vmul.f32 %v82, %v82
    %v85 = vsel %vm65, %v83, 0.0
    %86 = vadd.xlane.f32.xlu0 %v85
    %v87 = vpop.xlane.xlu0 %86
    %v88 = vsel %vm65, %v84, 0.0
    %89 = vadd.xlane.f32.xlu0 %v88
    %v90 = vpop.xlane.xlu0 %89
    %v91 = vmul.f32 %v87, %v78
    %v92 = vmul.f32 %v90, %v78
    %v93 = vadd.f32 %v91, 1e-05
    %v94 = vadd.f32 %v92, 1e-05
    %v95 = vrsqrt.pop %v93
    %v96 = vmul.f32 %v95, %v93
    %v97 = vmul.f32 %v96, %v95
    %v98 = vmul.f32 0.5, %v97
    %v99 = vsub.f32 1.5, %v98
    %v100 = vmul.f32 %v95, %v99
    %vm101 = vweird.f32 %v93
    %vm102 = vweird.f32 %v95
    %vm103 = vmor %vm101, %vm102
    %v104 = vsel %vm103, %v95, %v100
    %v105 = vrsqrt.pop %v94
    %v106 = vmul.f32 %v105, %v94
    %v107 = vmul.f32 %v106, %v105
    %v108 = vmul.f32 0.5, %v107
    %v109 = vsub.f32 1.5, %v108
    %v110 = vmul.f32 %v105, %v109
    %vm111 = vweird.f32 %v94
    %vm112 = vweird.f32 %v105
    %vm113 = vmor %vm111, %vm112
    %v114 = vsel %vm113, %v105, %v110
    %v115 = vmul.f32 %v81, %v104
    %v116 = vmul.f32 %v82, %v114
    %v117 = vperm.slane %v64, 4
    %v118 = vmul.f32 %v115, %v117
    %v119 = vmul.f32 %v116, %v117
    %v120 = vperm.slane %v64, 5
    %v121 = vadd.f32 %v118, %v120
    %v122 = vadd.f32 %v119, %v120
    %v123 = vld [vmem:[#allocation5] sm:$0xff]
    %v124 = vld [vmem:[#allocation5 + $0x8] sm:$0xff]
    %v125 = vld [vmem:[#allocation5 + $0x10] sm:$0xff]
    %v126 = vld [vmem:[#allocation5 + $0x18] sm:$0xff]
    %v127 = vperm.slane %v64, 0
    %v129 = vsel %vm65, %v121, 0
    %v132 = vsel %vm65, %v122, 0
    %134 = vmatpush.msra.mxu0 0.0
    %135 = vmatpush.msra.mxu0 0.0
    %136 = vmatpush.msra.mxu0 0.0
    %137 = vmatpush.msra.mxu0 0.0
    %138 = vmatpush.msra.mxu0 0.0
    %139 = vmatpush.msra.mxu0 0.0
    %140 = vmatpush.msra.mxu0 0.0
    %141 = vmatpush.msra.mxu0 0.0
    %142 = vmatpush.msra.mxu0 0.0
    %143 = vmatpush.msra.mxu0 0.0
    %144 = vmatpush.msra.mxu0 0.0
    %145 = vmatpush.msra.mxu0 0.0
    %146 = vmatpush.msra.mxu0 %v126
    %147 = vmatpush.msra.mxu0 %v125
    %148 = vmatpush.msra.mxu0 %v124
    %149 = vmatpush.msra.mxu0 %v123
    %150 = vmatmul.f32.gmra.mxu0 %v129
    %v151 = vpop.f32.mrf.mxu0
    %v152 = vadd.f32 %v127, %v151
    %153 = vmatmul.f32.gmra.mxu0 %v132
    %v154 = vpop.f32.mrf.mxu0
    %v155 = vadd.f32 %v127, %v154
    %156 = vdwg.mxu0
    %159 = vrot.lane.b32.xlu0 %v152, 120
    %v160 = vpop.permute.xlu0 %159
    %161 = vrot.lane.b32.xlu0 %v155, 120
    %v162 = vpop.permute.xlu0 %161
    %163 = vrot.lane.b32.xlu0 %v152, 112
    %v164 = vpop.permute.xlu0 %163
    %165 = vrot.lane.b32.xlu0 %v155, 112
    %v166 = vpop.permute.xlu0 %165
    %167 = vrot.lane.b32.xlu0 %v152, 104
    %v168 = vpop.permute.xlu0 %167
    %169 = vrot.lane.b32.xlu0 %v155, 104
    %v170 = vpop.permute.xlu0 %169
    %171 = vrot.lane.b32.xlu0 %v152, 96
    %v172 = vpop.permute.xlu0 %171
    %vm173 = vcmask 64512
    %v174 = vsel %vm173, %v152, 0
    %v176 = vsel %vm173, %v172, 0
    %178 = vmatpush.xpose.msra.mxu0 0.0
    %179 = vmatpush.xpose.msra.mxu0 0.0
    %180 = vmatpush.xpose.msra.mxu0 0.0
    %181 = vmatpush.xpose.msra.mxu0 0.0
    %182 = vmatpush.xpose.msra.mxu0 0.0
    %183 = vmatpush.xpose.msra.mxu0 0.0
    %184 = vmatpush.xpose.msra.mxu0 0.0
    %185 = vmatpush.xpose.msra.mxu0 0.0
    %186 = vmatpush.xpose.msra.mxu0 0.0
    %187 = vmatpush.xpose.msra.mxu0 0.0
    %188 = vmatpush.xpose.msra.mxu0 0.0
    %189 = vmatpush.xpose.msra.mxu0 0.0
    %190 = vmatpush.xpose.msra.mxu0 0.0
    %191 = vmatpush.xpose.msra.mxu0 0.0
    %192 = vmatpush.xpose.msra.mxu0 0.0
    %193 = vmatpush.xpose.msra.mxu0 %v176
    %194 = vmatmul.f32.gmra.mxu0 %v174
    %v195 = vpop.f32.mrf.mxu0
    %v196 = vadd.f32 0.0, %v195
    %197 = vdwg.mxu0
    %198 = vrot.lane.b32.xlu0 %v160, 96
    %v199 = vpop.permute.xlu0 %198
    %v200 = vsel %vm173, %v160, 0
    %v202 = vsel %vm173, %v199, 0
    %204 = vmatpush.xpose.msra.mxu0 0.0
    %205 = vmatpush.xpose.msra.mxu0 0.0
    %206 = vmatpush.xpose.msra.mxu0 0.0
    %207 = vmatpush.xpose.msra.mxu0 0.0
    %208 = vmatpush.xpose.msra.mxu0 0.0
    %209 = vmatpush.xpose.msra.mxu0 0.0
    %210 = vmatpush.xpose.msra.mxu0 0.0
    %211 = vmatpush.xpose.msra.mxu0 0.0
    %212 = vmatpush.xpose.msra.mxu0 0.0
    %213 = vmatpush.xpose.msra.mxu0 0.0
    %214 = vmatpush.xpose.msra.mxu0 0.0
    %215 = vmatpush.xpose.msra.mxu0 0.0
    %216 = vmatpush.xpose.msra.mxu0 0.0
    %217 = vmatpush.xpose.msra.mxu0 0.0
    %218 = vmatpush.xpose.msra.mxu0 0.0
    %219 = vmatpush.xpose.msra.mxu0 %v202
    %220 = vmatmul.f32.gmra.mxu0 %v200
    %v221 = vpop.f32.mrf.mxu0
    %v222 = vadd.f32 0.0, %v221
    %223 = vdwg.mxu0
    %224 = vrot.lane.b32.xlu0 %v164, 96
    %v225 = vpop.permute.xlu0 %224
    %v226 = vsel %vm173, %v164, 0
    %v228 = vsel %vm173, %v225, 0
    %230 = vmatpush.xpose.msra.mxu0 0.0
    %231 = vmatpush.xpose.msra.mxu0 0.0
    %232 = vmatpush.xpose.msra.mxu0 0.0
    %233 = vmatpush.xpose.msra.mxu0 0.0
    %234 = vmatpush.xpose.msra.mxu0 0.0
    %235 = vmatpush.xpose.msra.mxu0 0.0
    %236 = vmatpush.xpose.msra.mxu0 0.0
    %237 = vmatpush.xpose.msra.mxu0 0.0
    %238 = vmatpush.xpose.msra.mxu0 0.0
    %239 = vmatpush.xpose.msra.mxu0 0.0
    %240 = vmatpush.xpose.msra.mxu0 0.0
    %241 = vmatpush.xpose.msra.mxu0 0.0
    %242 = vmatpush.xpose.msra.mxu0 0.0
    %243 = vmatpush.xpose.msra.mxu0 0.0
    %244 = vmatpush.xpose.msra.mxu0 0.0
    %245 = vmatpush.xpose.msra.mxu0 %v228
    %246 = vmatmul.f32.gmra.mxu0 %v226
    %v247 = vpop.f32.mrf.mxu0
    %v248 = vadd.f32 0.0, %v247
    %249 = vdwg.mxu0
    %250 = vrot.lane.b32.xlu0 %v168, 96
    %v251 = vpop.permute.xlu0 %250
    %v252 = vsel %vm173, %v168, 0
    %v254 = vsel %vm173, %v251, 0
    %256 = vmatpush.xpose.msra.mxu0 0.0
    %257 = vmatpush.xpose.msra.mxu0 0.0
    %258 = vmatpush.xpose.msra.mxu0 0.0
    %259 = vmatpush.xpose.msra.mxu0 0.0
    %260 = vmatpush.xpose.msra.mxu0 0.0
    %261 = vmatpush.xpose.msra.mxu0 0.0
    %262 = vmatpush.xpose.msra.mxu0 0.0
    %263 = vmatpush.xpose.msra.mxu0 0.0
    %264 = vmatpush.xpose.msra.mxu0 0.0
    %265 = vmatpush.xpose.msra.mxu0 0.0
    %266 = vmatpush.xpose.msra.mxu0 0.0
    %267 = vmatpush.xpose.msra.mxu0 0.0
    %268 = vmatpush.xpose.msra.mxu0 0.0
    %269 = vmatpush.xpose.msra.mxu0 0.0
    %270 = vmatpush.xpose.msra.mxu0 0.0
    %271 = vmatpush.xpose.msra.mxu0 %v254
    %272 = vmatmul.f32.gmra.mxu0 %v252
    %v273 = vpop.f32.mrf.mxu0
    %v274 = vadd.f32 0.0, %v273
    %275 = vdwg.mxu0
    %276 = vrot.lane.b32.xlu0 %v155, 96
    %v277 = vpop.permute.xlu0 %276
    %v278 = vsel %vm173, %v155, 0
    %v280 = vsel %vm173, %v277, 0
    %282 = vmatpush.xpose.msra.mxu0 0.0
    %283 = vmatpush.xpose.msra.mxu0 0.0
    %284 = vmatpush.xpose.msra.mxu0 0.0
    %285 = vmatpush.xpose.msra.mxu0 0.0
    %286 = vmatpush.xpose.msra.mxu0 0.0
    %287 = vmatpush.xpose.msra.mxu0 0.0
    %288 = vmatpush.xpose.msra.mxu0 0.0
    %289 = vmatpush.xpose.msra.mxu0 0.0
    %290 = vmatpush.xpose.msra.mxu0 0.0
    %291 = vmatpush.xpose.msra.mxu0 0.0
    %292 = vmatpush.xpose.msra.mxu0 0.0
    %293 = vmatpush.xpose.msra.mxu0 0.0
    %294 = vmatpush.xpose.msra.mxu0 0.0
    %295 = vmatpush.xpose.msra.mxu0 0.0
    %296 = vmatpush.xpose.msra.mxu0 0.0
    %297 = vmatpush.xpose.msra.mxu0 %v280
    %298 = vmatmul.f32.gmra.mxu0 %v278
    %v299 = vpop.f32.mrf.mxu0
    %v300 = vadd.f32 0.0, %v299
    %301 = vdwg.mxu0
    %302 = vrot.lane.b32.xlu0 %v162, 96
    %v303 = vpop.permute.xlu0 %302
    %v304 = vsel %vm173, %v162, 0
    %v306 = vsel %vm173, %v303, 0
    %308 = vmatpush.xpose.msra.mxu0 0.0
    %309 = vmatpush.xpose.msra.mxu0 0.0
    %310 = vmatpush.xpose.msra.mxu0 0.0
    %311 = vmatpush.xpose.msra.mxu0 0.0
    %312 = vmatpush.xpose.msra.mxu0 0.0
    %313 = vmatpush.xpose.msra.mxu0 0.0
    %314 = vmatpush.xpose.msra.mxu0 0.0
    %315 = vmatpush.xpose.msra.mxu0 0.0
    %316 = vmatpush.xpose.msra.mxu0 0.0
    %317 = vmatpush.xpose.msra.mxu0 0.0
    %318 = vmatpush.xpose.msra.mxu0 0.0
    %319 = vmatpush.xpose.msra.mxu0 0.0
    %320 = vmatpush.xpose.msra.mxu0 0.0
    %321 = vmatpush.xpose.msra.mxu0 0.0
    %322 = vmatpush.xpose.msra.mxu0 0.0
    %323 = vmatpush.xpose.msra.mxu0 %v306
    %324 = vmatmul.f32.gmra.mxu0 %v304
    %v325 = vpop.f32.mrf.mxu0
    %v326 = vadd.f32 0.0, %v325
    %327 = vdwg.mxu0
    %328 = vrot.lane.b32.xlu0 %v166, 96
    %v329 = vpop.permute.xlu0 %328
    %v330 = vsel %vm173, %v166, 0
    %v332 = vsel %vm173, %v329, 0
    %334 = vmatpush.xpose.msra.mxu0 0.0
    %335 = vmatpush.xpose.msra.mxu0 0.0
    %336 = vmatpush.xpose.msra.mxu0 0.0
    %337 = vmatpush.xpose.msra.mxu0 0.0
    %338 = vmatpush.xpose.msra.mxu0 0.0
    %339 = vmatpush.xpose.msra.mxu0 0.0
    %340 = vmatpush.xpose.msra.mxu0 0.0
    %341 = vmatpush.xpose.msra.mxu0 0.0
    %342 = vmatpush.xpose.msra.mxu0 0.0
    %343 = vmatpush.xpose.msra.mxu0 0.0
    %344 = vmatpush.xpose.msra.mxu0 0.0
    %345 = vmatpush.xpose.msra.mxu0 0.0
    %346 = vmatpush.xpose.msra.mxu0 0.0
    %347 = vmatpush.xpose.msra.mxu0 0.0
    %348 = vmatpush.xpose.msra.mxu0 0.0
    %349 = vmatpush.xpose.msra.mxu0 %v332
    %350 = vmatmul.f32.gmra.mxu0 %v330
    %v351 = vpop.f32.mrf.mxu0
    %v352 = vadd.f32 0.0, %v351
    %353 = vdwg.mxu0
    %354 = vrot.lane.b32.xlu0 %v170, 96
    %v355 = vpop.permute.xlu0 %354
    %v356 = vsel %vm173, %v170, 0
    %v358 = vsel %vm173, %v355, 0
    %360 = vmatpush.xpose.msra.mxu0 0.0
    %361 = vmatpush.xpose.msra.mxu0 0.0
    %362 = vmatpush.xpose.msra.mxu0 0.0
    %363 = vmatpush.xpose.msra.mxu0 0.0
    %364 = vmatpush.xpose.msra.mxu0 0.0
    %365 = vmatpush.xpose.msra.mxu0 0.0
    %366 = vmatpush.xpose.msra.mxu0 0.0
    %367 = vmatpush.xpose.msra.mxu0 0.0
    %368 = vmatpush.xpose.msra.mxu0 0.0
    %369 = vmatpush.xpose.msra.mxu0 0.0
    %370 = vmatpush.xpose.msra.mxu0 0.0
    %371 = vmatpush.xpose.msra.mxu0 0.0
    %372 = vmatpush.xpose.msra.mxu0 0.0
    %373 = vmatpush.xpose.msra.mxu0 0.0
    %374 = vmatpush.xpose.msra.mxu0 0.0
    %375 = vmatpush.xpose.msra.mxu0 %v358
    %376 = vmatmul.f32.gmra.mxu0 %v356
    %v377 = vpop.f32.mrf.mxu0
    %v378 = vadd.f32 0.0, %v377
    %379 = vdwg.mxu0
    %v380 = vsel %vm173, %v196, -inf
    %381 = vmax.xlane.f32.xlu0 %v380
    %v382 = vpop.xlane.xlu0 %381
    %v383 = vsel %vm173, %v222, -inf
    %384 = vmax.xlane.f32.xlu0 %v383
    %v385 = vpop.xlane.xlu0 %384
    %v386 = vsel %vm173, %v248, -inf
    %387 = vmax.xlane.f32.xlu0 %v386
    %v388 = vpop.xlane.xlu0 %387
    %v389 = vsel %vm173, %v274, -inf
    %390 = vmax.xlane.f32.xlu0 %v389
    %v391 = vpop.xlane.xlu0 %390
    %v392 = vsel %vm173, %v300, -inf
    %393 = vmax.xlane.f32.xlu0 %v392
    %v394 = vpop.xlane.xlu0 %393
    %v395 = vsel %vm173, %v326, -inf
    %396 = vmax.xlane.f32.xlu0 %v395
    %v397 = vpop.xlane.xlu0 %396
    %v398 = vsel %vm173, %v352, -inf
    %399 = vmax.xlane.f32.xlu0 %v398
    %v400 = vpop.xlane.xlu0 %399
    %v401 = vsel %vm173, %v378, -inf
    %402 = vmax.xlane.f32.xlu0 %v401
    %v403 = vpop.xlane.xlu0 %402
    %v404 = vsub.f32 %v196, %v382
    %v405 = vsub.f32 %v222, %v385
    %v406 = vsub.f32 %v248, %v388
    %v407 = vsub.f32 %v274, %v391
    %v408 = vsub.f32 %v300, %v394
    %v409 = vsub.f32 %v326, %v397
    %v410 = vsub.f32 %v352, %v400
    %v411 = vsub.f32 %v378, %v403
    %v412 = vmul.f32 %v404, 1.442695
    %v413 = vpow.pop %v412
    %v414 = vmul.f32 %v405, 1.442695
    %v415 = vpow.pop %v414
    %v416 = vmul.f32 %v406, 1.442695
    %v417 = vpow.pop %v416
    %v418 = vmul.f32 %v407, 1.442695
    %v419 = vpow.pop %v418
    %v420 = vmul.f32 %v408, 1.442695
    %v421 = vpow.pop %v420
    %v422 = vmul.f32 %v409, 1.442695
    %v423 = vpow.pop %v422
    %v424 = vmul.f32 %v410, 1.442695
    %v425 = vpow.pop %v424
    %v426 = vmul.f32 %v411, 1.442695
    %v427 = vpow.pop %v426
    %v428 = vsel %vm173, %v413, 0.0
    %429 = vadd.xlane.f32.xlu0 %v428
    %v430 = vpop.xlane.xlu0 %429
    %v431 = vsel %vm173, %v415, 0.0
    %432 = vadd.xlane.f32.xlu0 %v431
    %v433 = vpop.xlane.xlu0 %432
    %v434 = vsel %vm173, %v417, 0.0
    %435 = vadd.xlane.f32.xlu0 %v434
    %v436 = vpop.xlane.xlu0 %435
    %v437 = vsel %vm173, %v419, 0.0
    %438 = vadd.xlane.f32.xlu0 %v437
    %v439 = vpop.xlane.xlu0 %438
    %v440 = vsel %vm173, %v421, 0.0
    %441 = vadd.xlane.f32.xlu0 %v440
    %v442 = vpop.xlane.xlu0 %441
    %v443 = vsel %vm173, %v423, 0.0
    %444 = vadd.xlane.f32.xlu0 %v443
    %v445 = vpop.xlane.xlu0 %444
    %v446 = vsel %vm173, %v425, 0.0
    %447 = vadd.xlane.f32.xlu0 %v446
    %v448 = vpop.xlane.xlu0 %447
    %v449 = vsel %vm173, %v427, 0.0
    %450 = vadd.xlane.f32.xlu0 %v449
    %v451 = vpop.xlane.xlu0 %450
    %v452 = vrcp.pop %v430
    %v453 = vmul.f32 %v430, %v452
    %v454 = vsub.f32 1.0, %v453
    %v455 = vmul.f32 %v452, %v454
    %v456 = vadd.f32 %v452, %v455
    %vm457 = vweird.f32 %v430
    %vm458 = vweird.f32 %v452
    %vm459 = vmor %vm457, %vm458
    %v460 = vsel %vm459, %v452, %v456
    %v461 = vand.u32 2147483647, %v430
    %vm462 = vcmp.eq.f32.partialorder %v461, 8.507059e+37
    %v463 = vand.u32 %v430, 2147483648
    %v464 = vor.u32 1.1754944e-38, %v463
    %v465 = vsel %vm462, %v464, %v460
    %v466 = vmul.f32 %v413, %v465
    %v467 = vrcp.pop %v433
    %v468 = vmul.f32 %v433, %v467
    %v469 = vsub.f32 1.0, %v468
    %v470 = vmul.f32 %v467, %v469
    %v471 = vadd.f32 %v467, %v470
    %vm472 = vweird.f32 %v433
    %vm473 = vweird.f32 %v467
    %vm474 = vmor %vm472, %vm473
    %v475 = vsel %vm474, %v467, %v471
    %v476 = vand.u32 2147483647, %v433
    %vm477 = vcmp.eq.f32.partialorder %v476, 8.507059e+37
    %v478 = vand.u32 %v433, 2147483648
    %v479 = vor.u32 1.1754944e-38, %v478
    %v480 = vsel %vm477, %v479, %v475
    %v481 = vmul.f32 %v415, %v480
    %v482 = vrcp.pop %v436
    %v483 = vmul.f32 %v436, %v482
    %v484 = vsub.f32 1.0, %v483
    %v485 = vmul.f32 %v482, %v484
    %v486 = vadd.f32 %v482, %v485
    %vm487 = vweird.f32 %v436
    %vm488 = vweird.f32 %v482
    %vm489 = vmor %vm487, %vm488
    %v490 = vsel %vm489, %v482, %v486
    %v491 = vand.u32 2147483647, %v436
    %vm492 = vcmp.eq.f32.partialorder %v491, 8.507059e+37
    %v493 = vand.u32 %v436, 2147483648
    %v494 = vor.u32 1.1754944e-38, %v493
    %v495 = vsel %vm492, %v494, %v490
    %v496 = vmul.f32 %v417, %v495
    %v497 = vrcp.pop %v439
    %v498 = vmul.f32 %v439, %v497
    %v499 = vsub.f32 1.0, %v498
    %v500 = vmul.f32 %v497, %v499
    %v501 = vadd.f32 %v497, %v500
    %vm502 = vweird.f32 %v439
    %vm503 = vweird.f32 %v497
    %vm504 = vmor %vm502, %vm503
    %v505 = vsel %vm504, %v497, %v501
    %v506 = vand.u32 2147483647, %v439
    %vm507 = vcmp.eq.f32.partialorder %v506, 8.507059e+37
    %v508 = vand.u32 %v439, 2147483648
    %v509 = vor.u32 1.1754944e-38, %v508
    %v510 = vsel %vm507, %v509, %v505
    %v511 = vmul.f32 %v419, %v510
    %v512 = vrcp.pop %v442
    %v513 = vmul.f32 %v442, %v512
    %v514 = vsub.f32 1.0, %v513
    %v515 = vmul.f32 %v512, %v514
    %v516 = vadd.f32 %v512, %v515
    %vm517 = vweird.f32 %v442
    %vm518 = vweird.f32 %v512
    %vm519 = vmor %vm517, %vm518
    %v520 = vsel %vm519, %v512, %v516
    %v521 = vand.u32 2147483647, %v442
    %vm522 = vcmp.eq.f32.partialorder %v521, 8.507059e+37
    %v523 = vand.u32 %v442, 2147483648
    %v524 = vor.u32 1.1754944e-38, %v523
    %v525 = vsel %vm522, %v524, %v520
    %v526 = vmul.f32 %v421, %v525
    %v527 = vrcp.pop %v445
    %v528 = vmul.f32 %v445, %v527
    %v529 = vsub.f32 1.0, %v528
    %v530 = vmul.f32 %v527, %v529
    %v531 = vadd.f32 %v527, %v530
    %vm532 = vweird.f32 %v445
    %vm533 = vweird.f32 %v527
    %vm534 = vmor %vm532, %vm533
    %v535 = vsel %vm534, %v527, %v531
    %v536 = vand.u32 2147483647, %v445
    %vm537 = vcmp.eq.f32.partialorder %v536, 8.507059e+37
    %v538 = vand.u32 %v445, 2147483648
    %v539 = vor.u32 1.1754944e-38, %v538
    %v540 = vsel %vm537, %v539, %v535
    %v541 = vmul.f32 %v423, %v540
    %v542 = vrcp.pop %v448
    %v543 = vmul.f32 %v448, %v542
    %v544 = vsub.f32 1.0, %v543
    %v545 = vmul.f32 %v542, %v544
    %v546 = vadd.f32 %v542, %v545
    %vm547 = vweird.f32 %v448
    %vm548 = vweird.f32 %v542
    %vm549 = vmor %vm547, %vm548
    %v550 = vsel %vm549, %v542, %v546
    %v551 = vand.u32 2147483647, %v448
    %vm552 = vcmp.eq.f32.partialorder %v551, 8.507059e+37
    %v553 = vand.u32 %v448, 2147483648
    %v554 = vor.u32 1.1754944e-38, %v553
    %v555 = vsel %vm552, %v554, %v550
    %v556 = vmul.f32 %v425, %v555
    %v557 = vrcp.pop %v451
    %v558 = vmul.f32 %v451, %v557
    %v559 = vsub.f32 1.0, %v558
    %v560 = vmul.f32 %v557, %v559
    %v561 = vadd.f32 %v557, %v560
    %vm562 = vweird.f32 %v451
    %vm563 = vweird.f32 %v557
    %vm564 = vmor %vm562, %vm563
    %v565 = vsel %vm564, %v557, %v561
    %v566 = vand.u32 2147483647, %v451
    %vm567 = vcmp.eq.f32.partialorder %v566, 8.507059e+37
    %v568 = vand.u32 %v451, 2147483648
    %v569 = vor.u32 1.1754944e-38, %v568
    %v570 = vsel %vm567, %v569, %v565
    %v571 = vmul.f32 %v427, %v570
    %572 = vrot.lane.b32.xlu0 %v152, 64
    %v573 = vpop.permute.xlu0 %572
    %v576 = vsel %vm173, %v466, 0
    %578 = vmatpush.msra.mxu0 0.0
    %579 = vmatpush.msra.mxu0 0.0
    %580 = vmatpush.msra.mxu0 0.0
    %581 = vmatpush.msra.mxu0 0.0
    %582 = vmatpush.msra.mxu0 0.0
    %583 = vmatpush.msra.mxu0 0.0
    %584 = vmatpush.msra.mxu0 0.0
    %585 = vmatpush.msra.mxu0 0.0
    %586 = vmatpush.msra.mxu0 0.0
    %587 = vmatpush.msra.mxu0 0.0
    %588 = vmatpush.msra.mxu0 0.0
    %589 = vmatpush.msra.mxu0 0.0
    %590 = vmatpush.msra.mxu0 0.0
    %591 = vmatpush.msra.mxu0 0.0
    %592 = vmatpush.msra.mxu0 0.0
    %593 = vmatpush.msra.mxu0 %v573
    %594 = vmatmul.f32.gmra.mxu0 %v576
    %v595 = vpop.f32.mrf.mxu0
    %v596 = vadd.f32 0.0, %v595
    %597 = vdwg.mxu0
    %598 = vrot.lane.b32.xlu0 %v160, 64
    %v599 = vpop.permute.xlu0 %598
    %v602 = vsel %vm173, %v481, 0
    %604 = vmatpush.msra.mxu0 0.0
    %605 = vmatpush.msra.mxu0 0.0
    %606 = vmatpush.msra.mxu0 0.0
    %607 = vmatpush.msra.mxu0 0.0
    %608 = vmatpush.msra.mxu0 0.0
    %609 = vmatpush.msra.mxu0 0.0
    %610 = vmatpush.msra.mxu0 0.0
    %611 = vmatpush.msra.mxu0 0.0
    %612 = vmatpush.msra.mxu0 0.0
    %613 = vmatpush.msra.mxu0 0.0
    %614 = vmatpush.msra.mxu0 0.0
    %615 = vmatpush.msra.mxu0 0.0
    %616 = vmatpush.msra.mxu0 0.0
    %617 = vmatpush.msra.mxu0 0.0
    %618 = vmatpush.msra.mxu0 0.0
    %619 = vmatpush.msra.mxu0 %v599
    %620 = vmatmul.f32.gmra.mxu0 %v602
    %v621 = vpop.f32.mrf.mxu0
    %v622 = vadd.f32 0.0, %v621
    %623 = vdwg.mxu0
    %624 = vrot.lane.b32.xlu0 %v164, 64
    %v625 = vpop.permute.xlu0 %624
    %v628 = vsel %vm173, %v496, 0
    %630 = vmatpush.msra.mxu0 0.0
    %631 = vmatpush.msra.mxu0 0.0
    %632 = vmatpush.msra.mxu0 0.0
    %633 = vmatpush.msra.mxu0 0.0
    %634 = vmatpush.msra.mxu0 0.0
    %635 = vmatpush.msra.mxu0 0.0
    %636 = vmatpush.msra.mxu0 0.0
    %637 = vmatpush.msra.mxu0 0.0
    %638 = vmatpush.msra.mxu0 0.0
    %639 = vmatpush.msra.mxu0 0.0
    %640 = vmatpush.msra.mxu0 0.0
    %641 = vmatpush.msra.mxu0 0.0
    %642 = vmatpush.msra.mxu0 0.0
    %643 = vmatpush.msra.mxu0 0.0
    %644 = vmatpush.msra.mxu0 0.0
    %645 = vmatpush.msra.mxu0 %v625
    %646 = vmatmul.f32.gmra.mxu0 %v628
    %v647 = vpop.f32.mrf.mxu0
    %v648 = vadd.f32 0.0, %v647
    %649 = vdwg.mxu0
    %650 = vrot.lane.b32.xlu0 %v168, 64
    %v651 = vpop.permute.xlu0 %650
    %v654 = vsel %vm173, %v511, 0
    %656 = vmatpush.msra.mxu0 0.0
    %657 = vmatpush.msra.mxu0 0.0
    %658 = vmatpush.msra.mxu0 0.0
    %659 = vmatpush.msra.mxu0 0.0
    %660 = vmatpush.msra.mxu0 0.0
    %661 = vmatpush.msra.mxu0 0.0
    %662 = vmatpush.msra.mxu0 0.0
    %663 = vmatpush.msra.mxu0 0.0
    %664 = vmatpush.msra.mxu0 0.0
    %665 = vmatpush.msra.mxu0 0.0
    %666 = vmatpush.msra.mxu0 0.0
    %667 = vmatpush.msra.mxu0 0.0
    %668 = vmatpush.msra.mxu0 0.0
    %669 = vmatpush.msra.mxu0 0.0
    %670 = vmatpush.msra.mxu0 0.0
    %671 = vmatpush.msra.mxu0 %v651
    %672 = vmatmul.f32.gmra.mxu0 %v654
    %v673 = vpop.f32.mrf.mxu0
    %v674 = vadd.f32 0.0, %v673
    %675 = vdwg.mxu0
    %676 = vrot.lane.b32.xlu0 %v155, 64
    %v677 = vpop.permute.xlu0 %676
    %v680 = vsel %vm173, %v526, 0
    %682 = vmatpush.msra.mxu0 0.0
    %683 = vmatpush.msra.mxu0 0.0
    %684 = vmatpush.msra.mxu0 0.0
    %685 = vmatpush.msra.mxu0 0.0
    %686 = vmatpush.msra.mxu0 0.0
    %687 = vmatpush.msra.mxu0 0.0
    %688 = vmatpush.msra.mxu0 0.0
    %689 = vmatpush.msra.mxu0 0.0
    %690 = vmatpush.msra.mxu0 0.0
    %691 = vmatpush.msra.mxu0 0.0
    %692 = vmatpush.msra.mxu0 0.0
    %693 = vmatpush.msra.mxu0 0.0
    %694 = vmatpush.msra.mxu0 0.0
    %695 = vmatpush.msra.mxu0 0.0
    %696 = vmatpush.msra.mxu0 0.0
    %697 = vmatpush.msra.mxu0 %v677
    %698 = vmatmul.f32.gmra.mxu0 %v680
    %v699 = vpop.f32.mrf.mxu0
    %v700 = vadd.f32 0.0, %v699
    %701 = vdwg.mxu0
    %702 = vrot.lane.b32.xlu0 %v162, 64
    %v703 = vpop.permute.xlu0 %702
    %v706 = vsel %vm173, %v541, 0
    %708 = vmatpush.msra.mxu0 0.0
    %709 = vmatpush.msra.mxu0 0.0
    %710 = vmatpush.msra.mxu0 0.0
    %711 = vmatpush.msra.mxu0 0.0
    %712 = vmatpush.msra.mxu0 0.0
    %713 = vmatpush.msra.mxu0 0.0
    %714 = vmatpush.msra.mxu0 0.0
    %715 = vmatpush.msra.mxu0 0.0
    %716 = vmatpush.msra.mxu0 0.0
    %717 = vmatpush.msra.mxu0 0.0
    %718 = vmatpush.msra.mxu0 0.0
    %719 = vmatpush.msra.mxu0 0.0
    %720 = vmatpush.msra.mxu0 0.0
    %721 = vmatpush.msra.mxu0 0.0
    %722 = vmatpush.msra.mxu0 0.0
    %723 = vmatpush.msra.mxu0 %v703
    %724 = vmatmul.f32.gmra.mxu0 %v706
    %v725 = vpop.f32.mrf.mxu0
    %v726 = vadd.f32 0.0, %v725
    %727 = vdwg.mxu0
    %728 = vrot.lane.b32.xlu0 %v166, 64
    %v729 = vpop.permute.xlu0 %728
    %v732 = vsel %vm173, %v556, 0
    %734 = vmatpush.msra.mxu0 0.0
    %735 = vmatpush.msra.mxu0 0.0
    %736 = vmatpush.msra.mxu0 0.0
    %737 = vmatpush.msra.mxu0 0.0
    %738 = vmatpush.msra.mxu0 0.0
    %739 = vmatpush.msra.mxu0 0.0
    %740 = vmatpush.msra.mxu0 0.0
    %741 = vmatpush.msra.mxu0 0.0
    %742 = vmatpush.msra.mxu0 0.0
    %743 = vmatpush.msra.mxu0 0.0
    %744 = vmatpush.msra.mxu0 0.0
    %745 = vmatpush.msra.mxu0 0.0
    %746 = vmatpush.msra.mxu0 0.0
    %747 = vmatpush.msra.mxu0 0.0
    %748 = vmatpush.msra.mxu0 0.0
    %749 = vmatpush.msra.mxu0 %v729
    %750 = vmatmul.f32.gmra.mxu0 %v732
    %v751 = vpop.f32.mrf.mxu0
    %v752 = vadd.f32 0.0, %v751
    %753 = vdwg.mxu0
    %754 = vrot.lane.b32.xlu0 %v170, 64
    %v755 = vpop.permute.xlu0 %754
    %v758 = vsel %vm173, %v571, 0
    %760 = vmatpush.msra.mxu0 0.0
    %761 = vmatpush.msra.mxu0 0.0
    %762 = vmatpush.msra.mxu0 0.0
    %763 = vmatpush.msra.mxu0 0.0
    %764 = vmatpush.msra.mxu0 0.0
    %765 = vmatpush.msra.mxu0 0.0
    %766 = vmatpush.msra.mxu0 0.0
    %767 = vmatpush.msra.mxu0 0.0
    %768 = vmatpush.msra.mxu0 0.0
    %769 = vmatpush.msra.mxu0 0.0
    %770 = vmatpush.msra.mxu0 0.0
    %771 = vmatpush.msra.mxu0 0.0
    %772 = vmatpush.msra.mxu0 0.0
    %773 = vmatpush.msra.mxu0 0.0
    %774 = vmatpush.msra.mxu0 0.0
    %775 = vmatpush.msra.mxu0 %v755
    %776 = vmatmul.f32.gmra.mxu0 %v758
    %v777 = vpop.f32.mrf.mxu0
    %v778 = vadd.f32 0.0, %v777
    %779 = vdwg.mxu0
    %v780 = vld [vmem:[#allocation5 + $0x20] sm:$0xff]
    %v781 = vld [vmem:[#allocation5 + $0x28] sm:$0xff]
    %v782 = vld [vmem:[#allocation5 + $0x30] sm:$0xff]
    %v783 = vld [vmem:[#allocation5 + $0x38] sm:$0xff]
    %v785 = vsel %vm173, %v596, 0
    %787 = vmatpush.msra.mxu0 0.0
    %788 = vmatpush.msra.mxu0 0.0
    %789 = vmatpush.msra.mxu0 0.0
    %790 = vmatpush.msra.mxu0 0.0
    %791 = vmatpush.msra.mxu0 0.0
    %792 = vmatpush.msra.mxu0 0.0
    %793 = vmatpush.msra.mxu0 0.0
    %794 = vmatpush.msra.mxu0 0.0
    %795 = vmatpush.msra.mxu0 0.0
    %796 = vmatpush.msra.mxu0 0.0
    %797 = vmatpush.msra.mxu0 0.0
    %798 = vmatpush.msra.mxu0 0.0
    %799 = vmatpush.msra.mxu0 0.0
    %800 = vmatpush.msra.mxu0 0.0
    %801 = vmatpush.msra.mxu0 0.0
    %802 = vmatpush.msra.mxu0 %v780
    %803 = vmatmul.f32.gmra.mxu0 %v785
    %v804 = vpop.f32.mrf.mxu0
    %v805 = vadd.f32 0.0, %v804
    %806 = vdwg.mxu0
    %v808 = vsel %vm173, %v622, 0
    %810 = vmatpush.msra.mxu0 0.0
    %811 = vmatpush.msra.mxu0 0.0
    %812 = vmatpush.msra.mxu0 0.0
    %813 = vmatpush.msra.mxu0 0.0
    %814 = vmatpush.msra.mxu0 0.0
    %815 = vmatpush.msra.mxu0 0.0
    %816 = vmatpush.msra.mxu0 0.0
    %817 = vmatpush.msra.mxu0 0.0
    %818 = vmatpush.msra.mxu0 0.0
    %819 = vmatpush.msra.mxu0 0.0
    %820 = vmatpush.msra.mxu0 0.0
    %821 = vmatpush.msra.mxu0 0.0
    %822 = vmatpush.msra.mxu0 0.0
    %823 = vmatpush.msra.mxu0 0.0
    %824 = vmatpush.msra.mxu0 0.0
    %825 = vmatpush.msra.mxu0 %v781
    %826 = vmatmul.f32.gmra.mxu0 %v808
    %v827 = vpop.f32.mrf.mxu0
    %v828 = vadd.f32 0.0, %v827
    %829 = vdwg.mxu0
    %v831 = vsel %vm173, %v648, 0
    %833 = vmatpush.msra.mxu0 0.0
    %834 = vmatpush.msra.mxu0 0.0
    %835 = vmatpush.msra.mxu0 0.0
    %836 = vmatpush.msra.mxu0 0.0
    %837 = vmatpush.msra.mxu0 0.0
    %838 = vmatpush.msra.mxu0 0.0
    %839 = vmatpush.msra.mxu0 0.0
    %840 = vmatpush.msra.mxu0 0.0
    %841 = vmatpush.msra.mxu0 0.0
    %842 = vmatpush.msra.mxu0 0.0
    %843 = vmatpush.msra.mxu0 0.0
    %844 = vmatpush.msra.mxu0 0.0
    %845 = vmatpush.msra.mxu0 0.0
    %846 = vmatpush.msra.mxu0 0.0
    %847 = vmatpush.msra.mxu0 0.0
    %848 = vmatpush.msra.mxu0 %v782
    %849 = vmatmul.f32.gmra.mxu0 %v831
    %v850 = vpop.f32.mrf.mxu0
    %v851 = vadd.f32 0.0, %v850
    %852 = vdwg.mxu0
    %v854 = vsel %vm173, %v674, 0
    %856 = vmatpush.msra.mxu0 0.0
    %857 = vmatpush.msra.mxu0 0.0
    %858 = vmatpush.msra.mxu0 0.0
    %859 = vmatpush.msra.mxu0 0.0
    %860 = vmatpush.msra.mxu0 0.0
    %861 = vmatpush.msra.mxu0 0.0
    %862 = vmatpush.msra.mxu0 0.0
    %863 = vmatpush.msra.mxu0 0.0
    %864 = vmatpush.msra.mxu0 0.0
    %865 = vmatpush.msra.mxu0 0.0
    %866 = vmatpush.msra.mxu0 0.0
    %867 = vmatpush.msra.mxu0 0.0
    %868 = vmatpush.msra.mxu0 0.0
    %869 = vmatpush.msra.mxu0 0.0
    %870 = vmatpush.msra.mxu0 0.0
    %871 = vmatpush.msra.mxu0 %v783
    %872 = vmatmul.f32.gmra.mxu0 %v854
    %v873 = vpop.f32.mrf.mxu0
    %v874 = vadd.f32 0.0, %v873
    %875 = vdwg.mxu0
    %v877 = vsel %vm173, %v700, 0
    %879 = vmatpush.msra.mxu0 0.0
    %880 = vmatpush.msra.mxu0 0.0
    %881 = vmatpush.msra.mxu0 0.0
    %882 = vmatpush.msra.mxu0 0.0
    %883 = vmatpush.msra.mxu0 0.0
    %884 = vmatpush.msra.mxu0 0.0
    %885 = vmatpush.msra.mxu0 0.0
    %886 = vmatpush.msra.mxu0 0.0
    %887 = vmatpush.msra.mxu0 0.0
    %888 = vmatpush.msra.mxu0 0.0
    %889 = vmatpush.msra.mxu0 0.0
    %890 = vmatpush.msra.mxu0 0.0
    %891 = vmatpush.msra.mxu0 0.0
    %892 = vmatpush.msra.mxu0 0.0
    %893 = vmatpush.msra.mxu0 0.0
    %894 = vmatpush.msra.mxu0 %v780
    %895 = vmatmul.f32.gmra.mxu0 %v877
    %v896 = vpop.f32.mrf.mxu0
    %v897 = vadd.f32 0.0, %v896
    %898 = vdwg.mxu0
    %v900 = vsel %vm173, %v726, 0
    %902 = vmatpush.msra.mxu0 0.0
    %903 = vmatpush.msra.mxu0 0.0
    %904 = vmatpush.msra.mxu0 0.0
    %905 = vmatpush.msra.mxu0 0.0
    %906 = vmatpush.msra.mxu0 0.0
    %907 = vmatpush.msra.mxu0 0.0
    %908 = vmatpush.msra.mxu0 0.0
    %909 = vmatpush.msra.mxu0 0.0
    %910 = vmatpush.msra.mxu0 0.0
    %911 = vmatpush.msra.mxu0 0.0
    %912 = vmatpush.msra.mxu0 0.0
    %913 = vmatpush.msra.mxu0 0.0
    %914 = vmatpush.msra.mxu0 0.0
    %915 = vmatpush.msra.mxu0 0.0
    %916 = vmatpush.msra.mxu0 0.0
    %917 = vmatpush.msra.mxu0 %v781
    %918 = vmatmul.f32.gmra.mxu0 %v900
    %v919 = vpop.f32.mrf.mxu0
    %v920 = vadd.f32 0.0, %v919
    %921 = vdwg.mxu0
    %v923 = vsel %vm173, %v752, 0
    %925 = vmatpush.msra.mxu0 0.0
    %926 = vmatpush.msra.mxu0 0.0
    %927 = vmatpush.msra.mxu0 0.0
    %928 = vmatpush.msra.mxu0 0.0
    %929 = vmatpush.msra.mxu0 0.0
    %930 = vmatpush.msra.mxu0 0.0
    %931 = vmatpush.msra.mxu0 0.0
    %932 = vmatpush.msra.mxu0 0.0
    %933 = vmatpush.msra.mxu0 0.0
    %934 = vmatpush.msra.mxu0 0.0
    %935 = vmatpush.msra.mxu0 0.0
    %936 = vmatpush.msra.mxu0 0.0
    %937 = vmatpush.msra.mxu0 0.0
    %938 = vmatpush.msra.mxu0 0.0
    %939 = vmatpush.msra.mxu0 0.0
    %940 = vmatpush.msra.mxu0 %v782
    %941 = vmatmul.f32.gmra.mxu0 %v923
    %v942 = vpop.f32.mrf.mxu0
    %v943 = vadd.f32 0.0, %v942
    %944 = vdwg.mxu0
    %v946 = vsel %vm173, %v778, 0
    %948 = vmatpush.msra.mxu0 0.0
    %949 = vmatpush.msra.mxu0 0.0
    %950 = vmatpush.msra.mxu0 0.0
    %951 = vmatpush.msra.mxu0 0.0
    %952 = vmatpush.msra.mxu0 0.0
    %953 = vmatpush.msra.mxu0 0.0
    %954 = vmatpush.msra.mxu0 0.0
    %955 = vmatpush.msra.mxu0 0.0
    %956 = vmatpush.msra.mxu0 0.0
    %957 = vmatpush.msra.mxu0 0.0
    %958 = vmatpush.msra.mxu0 0.0
    %959 = vmatpush.msra.mxu0 0.0
    %960 = vmatpush.msra.mxu0 0.0
    %961 = vmatpush.msra.mxu0 0.0
    %962 = vmatpush.msra.mxu0 0.0
    %963 = vmatpush.msra.mxu0 %v783
    %964 = vmatmul.f32.gmra.mxu0 %v946
    %v965 = vpop.f32.mrf.mxu0
    %v966 = vadd.f32 0.0, %v965
    %967 = vdwg.mxu0
    %v968 = vsel %vm65, %v805, 0.0
    %v969 = vsel %vm65, %v828, 0.0
    %v970 = vadd.f32 %v968, %v969
    %v971 = vsel %vm65, %v851, 0.0
    %v972 = vadd.f32 %v970, %v971
    %v973 = vsel %vm65, %v874, 0.0
    %v974 = vadd.f32 %v972, %v973
    %v975 = vsel %vm65, %v897, 0.0
    %v976 = vsel %vm65, %v920, 0.0
    %v977 = vadd.f32 %v975, %v976
    %v978 = vsel %vm65, %v943, 0.0
    %v979 = vadd.f32 %v977, %v978
    %v980 = vsel %vm65, %v966, 0.0
    %v981 = vadd.f32 %v979, %v980
    %v982 = vperm.slane %v64, 1
    %v983 = vadd.f32 %v974, %v982
    %v984 = vadd.f32 %v981, %v982
    %v985 = vadd.f32 %v62, %v983
    %v986 = vadd.f32 %v63, %v984
    %v987 = vsel %vm65, %v985, 0.0
    %988 = vadd.xlane.f32.xlu0 %v987
    %v989 = vpop.xlane.xlu0 %988
    %v990 = vsel %vm65, %v986, 0.0
    %991 = vadd.xlane.f32.xlu0 %v990
    %v992 = vpop.xlane.xlu0 %991
    %v993 = vmul.f32 %v989, %v78
    %v994 = vmul.f32 %v992, %v78
    %v995 = vsub.f32 %v985, %v993
    %v996 = vsub.f32 %v986, %v994
    %v997 = vmul.f32 %v995, %v995
    %v998 = vmul.f32 %v996, %v996
    %v999 = vsel %vm65, %v997, 0.0
    %1000 = vadd.xlane.f32.xlu0 %v999
    %v1001 = vpop.xlane.xlu0 %1000
    %v1002 = vsel %vm65, %v998, 0.0
    %1003 = vadd.xlane.f32.xlu0 %v1002
    %v1004 = vpop.xlane.xlu0 %1003
    %v1005 = vmul.f32 %v1001, %v78
    %v1006 = vmul.f32 %v1004, %v78
    %v1007 = vadd.f32 %v1005, 1e-05
    %v1008 = vadd.f32 %v1006, 1e-05
    %v1009 = vrsqrt.pop %v1007
    %v1010 = vmul.f32 %v1009, %v1007
    %v1011 = vmul.f32 %v1010, %v1009
    %v1012 = vmul.f32 0.5, %v1011
    %v1013 = vsub.f32 1.5, %v1012
    %v1014 = vmul.f32 %v1009, %v1013
    %vm1015 = vweird.f32 %v1007
    %vm1016 = vweird.f32 %v1009
    %vm1017 = vmor %vm1015, %vm1016
    %v1018 = vsel %vm1017, %v1009, %v1014
    %v1019 = vrsqrt.pop %v1008
    %v1020 = vmul.f32 %v1019, %v1008
    %v1021 = vmul.f32 %v1020, %v1019
    %v1022 = vmul.f32 0.5, %v1021
    %v1023 = vsub.f32 1.5, %v1022
    %v1024 = vmul.f32 %v1019, %v1023
    %vm1025 = vweird.f32 %v1008
    %vm1026 = vweird.f32 %v1019
    %vm1027 = vmor %vm1025, %vm1026
    %v1028 = vsel %vm1027, %v1019, %v1024
    %v1029 = vmul.f32 %v995, %v1018
    %v1030 = vmul.f32 %v996, %v1028
    %v1031 = vperm.slane %v64, 6
    %v1032 = vmul.f32 %v1029, %v1031
    %v1033 = vmul.f32 %v1030, %v1031
    %v1034 = vperm.slane %v64, 7
    %v1035 = vadd.f32 %v1032, %v1034
    %v1036 = vadd.f32 %v1033, %v1034
    %v1037 = vld [vmem:[#allocation5 + $0x40] sm:$0xff]
    %v1038 = vld [vmem:[#allocation5 + $0x48] sm:$0xff]
    %v1039 = vld [vmem:[#allocation5 + $0x50] sm:$0xff]
    %v1040 = vld [vmem:[#allocation5 + $0x58] sm:$0xff]
    %v1041 = vperm.slane %v64, 2
    %v1043 = vsel %vm65, %v1035, 0
    %v1046 = vsel %vm65, %v1036, 0
    %1048 = vmatpush.msra.mxu0 0.0
    %1049 = vmatpush.msra.mxu0 0.0
    %1050 = vmatpush.msra.mxu0 0.0
    %1051 = vmatpush.msra.mxu0 0.0
    %1052 = vmatpush.msra.mxu0 0.0
    %1053 = vmatpush.msra.mxu0 0.0
    %1054 = vmatpush.msra.mxu0 0.0
    %1055 = vmatpush.msra.mxu0 0.0
    %1056 = vmatpush.msra.mxu0 0.0
    %1057 = vmatpush.msra.mxu0 0.0
    %1058 = vmatpush.msra.mxu0 0.0
    %1059 = vmatpush.msra.mxu0 0.0
    %1060 = vmatpush.msra.mxu0 %v1040
    %1061 = vmatpush.msra.mxu0 %v1039
    %1062 = vmatpush.msra.mxu0 %v1038
    %1063 = vmatpush.msra.mxu0 %v1037
    %1064 = vmatmul.f32.gmra.mxu0 %v1043
    %v1065 = vpop.f32.mrf.mxu0
    %v1066 = vadd.f32 %v1041, %v1065
    %1067 = vmatmul.f32.gmra.mxu0 %v1046
    %v1068 = vpop.f32.mrf.mxu0
    %v1069 = vadd.f32 %v1041, %v1068
    %1070 = vdwg.mxu0
    %v1071 = vmul.f32 %v1066, 0.5
    %v1072 = vmul.f32 %v1069, 0.5
    %v1073 = vmul.f32 %v1066, 0.70710677
    %v1074 = vmul.f32 %v1069, 0.70710677
    %v1075 = vmul.f32 %v1073, %v1073
    %v1076 = vmin.f32 16.0, %v1075
    %v1077 = vmul.f32 %v1076, 2.1237322e-06
    %v1078 = vadd.f32 %v1077, 0.00028619796
    %v1079 = vmul.f32 %v1076, %v1078
    %v1080 = vadd.f32 %v1079, 0.0036580483
    %v1081 = vmul.f32 %v1076, %v1080
    %v1082 = vadd.f32 %v1081, 0.05243302
    %v1083 = vmul.f32 %v1076, %v1082
    %v1084 = vadd.f32 %v1083, 0.18741608
    %v1085 = vmul.f32 %v1076, %v1084
    %v1086 = vadd.f32 %v1085, 1.1283791
    %v1087 = vmul.f32 %v1073, %v1086
    %v1088 = vmul.f32 %v1076, 3.8918573e-05
    %v1089 = vadd.f32 %v1088, 0.001143296
    %v1090 = vmul.f32 %v1076, %v1089
    %v1091 = vadd.f32 %v1090, 0.014752088
    %v1092 = vmul.f32 %v1076, %v1091
    %v1093 = vadd.f32 %v1092, 0.112945676
    %v1094 = vmul.f32 %v1076, %v1093
    %v1095 = vadd.f32 %v1094, 0.4994258
    %v1096 = vmul.f32 %v1076, %v1095
    %v1097 = vadd.f32 %v1096, 1.0
    %v1098 = vrcp.pop %v1097
    %v1099 = vmul.f32 %v1097, %v1098
    %v1100 = vsub.f32 1.0, %v1099
    %v1101 = vmul.f32 %v1098, %v1100
    %v1102 = vadd.f32 %v1098, %v1101
    %vm1103 = vweird.f32 %v1097
    %vm1104 = vweird.f32 %v1098
    %vm1105 = vmor %vm1103, %vm1104
    %v1106 = vsel %vm1105, %v1098, %v1102
    %v1107 = vand.u32 2147483647, %v1097
    %vm1108 = vcmp.eq.f32.partialorder %v1107, 8.507059e+37
    %v1109 = vand.u32 %v1097, 2147483648
    %v1110 = vor.u32 1.1754944e-38, %v1109
    %v1111 = vsel %vm1108, %v1110, %v1106
    %v1112 = vmul.f32 %v1087, %v1111
    %v1113 = vmin.f32 %v1112, 1.0
    %v1114 = vmax.f32 %v1113, -1.0
    %v1115 = vmul.f32 %v1074, %v1074
    %v1116 = vmin.f32 16.0, %v1115
    %v1117 = vmul.f32 %v1116, 2.1237322e-06
    %v1118 = vadd.f32 %v1117, 0.00028619796
    %v1119 = vmul.f32 %v1116, %v1118
    %v1120 = vadd.f32 %v1119, 0.0036580483
    %v1121 = vmul.f32 %v1116, %v1120
    %v1122 = vadd.f32 %v1121, 0.05243302
    %v1123 = vmul.f32 %v1116, %v1122
    %v1124 = vadd.f32 %v1123, 0.18741608
    %v1125 = vmul.f32 %v1116, %v1124
    %v1126 = vadd.f32 %v1125, 1.1283791
    %v1127 = vmul.f32 %v1074, %v1126
    %v1128 = vmul.f32 %v1116, 3.8918573e-05
    %v1129 = vadd.f32 %v1128, 0.001143296
    %v1130 = vmul.f32 %v1116, %v1129
    %v1131 = vadd.f32 %v1130, 0.014752088
    %v1132 = vmul.f32 %v1116, %v1131
    %v1133 = vadd.f32 %v1132, 0.112945676
    %v1134 = vmul.f32 %v1116, %v1133
    %v1135 = vadd.f32 %v1134, 0.4994258
    %v1136 = vmul.f32 %v1116, %v1135
    %v1137 = vadd.f32 %v1136, 1.0
    %v1138 = vrcp.pop %v1137
    %v1139 = vmul.f32 %v1137, %v1138
    %v1140 = vsub.f32 1.0, %v1139
    %v1141 = vmul.f32 %v1138, %v1140
    %v1142 = vadd.f32 %v1138, %v1141
    %vm1143 = vweird.f32 %v1137
    %vm1144 = vweird.f32 %v1138
    %vm1145 = vmor %vm1143, %vm1144
    %v1146 = vsel %vm1145, %v1138, %v1142
    %v1147 = vand.u32 2147483647, %v1137
    %vm1148 = vcmp.eq.f32.partialorder %v1147, 8.507059e+37
    %v1149 = vand.u32 %v1137, 2147483648
    %v1150 = vor.u32 1.1754944e-38, %v1149
    %v1151 = vsel %vm1148, %v1150, %v1146
    %v1152 = vmul.f32 %v1127, %v1151
    %v1153 = vmin.f32 %v1152, 1.0
    %v1154 = vmax.f32 %v1153, -1.0
    %v1155 = vadd.f32 %v1114, 1.0
    %v1156 = vadd.f32 %v1154, 1.0
    %v1157 = vmul.f32 %v1071, %v1155
    %v1158 = vmul.f32 %v1072, %v1156
    %v1159 = vld [vmem:[#allocation5 + $0x60] sm:$0xff]
    %v1160 = vld [vmem:[#allocation5 + $0x68] sm:$0xff]
    %v1161 = vld [vmem:[#allocation5 + $0x70] sm:$0xff]
    %v1162 = vld [vmem:[#allocation5 + $0x78] sm:$0xff]
    %v1163 = vld [vmem:[#allocation5 + $0x80] sm:$0xff]
    %v1164 = vld [vmem:[#allocation5 + $0x88] sm:$0xff]
    %v1165 = vld [vmem:[#allocation5 + $0x90] sm:$0xff]
    %v1166 = vld [vmem:[#allocation5 + $0x98] sm:$0xff]
    %v1167 = vld [vmem:[#allocation5 + $0xa0] sm:$0xff]
    %v1168 = vld [vmem:[#allocation5 + $0xa8] sm:$0xff]
    %v1169 = vld [vmem:[#allocation5 + $0xb0] sm:$0xff]
    %v1170 = vld [vmem:[#allocation5 + $0xb8] sm:$0xff]
    %v1171 = vld [vmem:[#allocation5 + $0xc0] sm:$0xff]
    %v1172 = vld [vmem:[#allocation5 + $0xc8] sm:$0xff]
    %v1173 = vld [vmem:[#allocation5 + $0xd0] sm:$0xff]
    %v1174 = vld [vmem:[#allocation5 + $0xd8] sm:$0xff]
    %1175 = vmatpush.msra.mxu0 %v1174
    %1176 = vmatpush.msra.mxu0 %v1173
    %1177 = vmatpush.msra.mxu0 %v1172
    %1178 = vmatpush.msra.mxu0 %v1171
    %1179 = vmatpush.msra.mxu0 %v1170
    %1180 = vmatpush.msra.mxu0 %v1169
    %1181 = vmatpush.msra.mxu0 %v1168
    %1182 = vmatpush.msra.mxu0 %v1167
    %1183 = vmatpush.msra.mxu0 %v1166
    %1184 = vmatpush.msra.mxu0 %v1165
    %1185 = vmatpush.msra.mxu0 %v1164
    %1186 = vmatpush.msra.mxu0 %v1163
    %1187 = vmatpush.msra.mxu0 %v1162
    %1188 = vmatpush.msra.mxu0 %v1161
    %1189 = vmatpush.msra.mxu0 %v1160
    %1190 = vmatpush.msra.mxu0 %v1159
    %1191 = vmatmul.f32.gmra.mxu0 %v1157
    %v1192 = vpop.f32.mrf.mxu0
    %v1193 = vadd.f32 0.0, %v1192
    %1194 = vmatmul.f32.gmra.mxu0 %v1158
    %v1195 = vpop.f32.mrf.mxu0
    %v1196 = vadd.f32 0.0, %v1195
    %1197 = vdwg.mxu0
    %v1198 = vadd.f32 %v985, %v1193
    %v1199 = vadd.f32 %v986, %v1196
    %v1200 = vperm.slane %v64, 3
    %v1201 = vadd.f32 %v1198, %v1200
    %v1202 = vadd.f32 %v1199, %v1200
    %s1203 = scalar_lea.vmem [#allocation7], 8
    %v1204 = vld [vmem:[%s1203] sm:$0xff]
    %v1205 = vsel %vm65, %v1201, 0.0
    %1206 = vadd.xlane.f32.xlu0 %v1205
    %v1207 = vpop.xlane.xlu0 %1206
    %v1208 = vsel %vm65, %v1202, 0.0
    %1209 = vadd.xlane.f32.xlu0 %v1208
    %v1210 = vpop.xlane.xlu0 %1209
    %v1211 = vmul.f32 %v1207, %v78
    %v1212 = vmul.f32 %v1210, %v78
    %v1213 = vsub.f32 %v1201, %v1211
    %v1214 = vsub.f32 %v1202, %v1212
    %v1215 = vmul.f32 %v1213, %v1213
    %v1216 = vmul.f32 %v1214, %v1214
    %v1217 = vsel %vm65, %v1215, 0.0
    %1218 = vadd.xlane.f32.xlu0 %v1217
    %v1219 = vpop.xlane.xlu0 %1218
    %v1220 = vsel %vm65, %v1216, 0.0
    %1221 = vadd.xlane.f32.xlu0 %v1220
    %v1222 = vpop.xlane.xlu0 %1221
    %v1223 = vmul.f32 %v1219, %v78
    %v1224 = vmul.f32 %v1222, %v78
    %v1225 = vadd.f32 %v1223, 1e-05
    %v1226 = vadd.f32 %v1224, 1e-05
    %v1227 = vrsqrt.pop %v1225
    %v1228 = vmul.f32 %v1227, %v1225
    %v1229 = vmul.f32 %v1228, %v1227
    %v1230 = vmul.f32 0.5, %v1229
    %v1231 = vsub.f32 1.5, %v1230
    %v1232 = vmul.f32 %v1227, %v1231
    %vm1233 = vweird.f32 %v1225
    %vm1234 = vweird.f32 %v1227
    %vm1235 = vmor %vm1233, %vm1234
    %v1236 = vsel %vm1235, %v1227, %v1232
    %v1237 = vrsqrt.pop %v1226
    %v1238 = vmul.f32 %v1237, %v1226
    %v1239 = vmul.f32 %v1238, %v1237
    %v1240 = vmul.f32 0.5, %v1239
    %v1241 = vsub.f32 1.5, %v1240
    %v1242 = vmul.f32 %v1237, %v1241
    %vm1243 = vweird.f32 %v1226
    %vm1244 = vweird.f32 %v1237
    %vm1245 = vmor %vm1243, %vm1244
    %v1246 = vsel %vm1245, %v1237, %v1242
    %v1247 = vmul.f32 %v1213, %v1236
    %v1248 = vmul.f32 %v1214, %v1246
    %v1249 = vperm.slane %v1204, 4
    %v1250 = vmul.f32 %v1247, %v1249
    %v1251 = vmul.f32 %v1248, %v1249
    %v1252 = vperm.slane %v1204, 5
    %v1253 = vadd.f32 %v1250, %v1252
    %v1254 = vadd.f32 %v1251, %v1252
    %s1255 = scalar_lea.vmem [#allocation5], 224
    %v1256 = vld [vmem:[%s1255] sm:$0xff]
    %v1257 = vld [vmem:[%s1255 + $0x8] sm:$0xff]
    %v1258 = vld [vmem:[%s1255 + $0x10] sm:$0xff]
    %v1259 = vld [vmem:[%s1255 + $0x18] sm:$0xff]
    %v1260 = vperm.slane %v1204, 0
    %v1262 = vsel %vm65, %v1253, 0
    %v1265 = vsel %vm65, %v1254, 0
    %1267 = vmatpush.msra.mxu0 0.0
    %1268 = vmatpush.msra.mxu0 0.0
    %1269 = vmatpush.msra.mxu0 0.0
    %1270 = vmatpush.msra.mxu0 0.0
    %1271 = vmatpush.msra.mxu0 0.0
    %1272 = vmatpush.msra.mxu0 0.0
    %1273 = vmatpush.msra.mxu0 0.0
    %1274 = vmatpush.msra.mxu0 0.0
    %1275 = vmatpush.msra.mxu0 0.0
    %1276 = vmatpush.msra.mxu0 0.0
    %1277 = vmatpush.msra.mxu0 0.0
    %1278 = vmatpush.msra.mxu0 0.0
    %1279 = vmatpush.msra.mxu0 %v1259
    %1280 = vmatpush.msra.mxu0 %v1258
    %1281 = vmatpush.msra.mxu0 %v1257
    %1282 = vmatpush.msra.mxu0 %v1256
    %1283 = vmatmul.f32.gmra.mxu0 %v1262
    %v1284 = vpop.f32.mrf.mxu0
    %v1285 = vadd.f32 %v1260, %v1284
    %1286 = vmatmul.f32.gmra.mxu0 %v1265
    %v1287 = vpop.f32.mrf.mxu0
    %v1288 = vadd.f32 %v1260, %v1287
    %1289 = vdwg.mxu0
    %1292 = vrot.lane.b32.xlu0 %v1285, 120
    %v1293 = vpop.permute.xlu0 %1292
    %1294 = vrot.lane.b32.xlu0 %v1288, 120
    %v1295 = vpop.permute.xlu0 %1294
    %1296 = vrot.lane.b32.xlu0 %v1285, 112
    %v1297 = vpop.permute.xlu0 %1296
    %1298 = vrot.lane.b32.xlu0 %v1288, 112
    %v1299 = vpop.permute.xlu0 %1298
    %1300 = vrot.lane.b32.xlu0 %v1285, 104
    %v1301 = vpop.permute.xlu0 %1300
    %1302 = vrot.lane.b32.xlu0 %v1288, 104
    %v1303 = vpop.permute.xlu0 %1302
    %1304 = vrot.lane.b32.xlu0 %v1285, 96
    %v1305 = vpop.permute.xlu0 %1304
    %v1306 = vsel %vm173, %v1285, 0
    %v1308 = vsel %vm173, %v1305, 0
    %1310 = vmatpush.xpose.msra.mxu0 0.0
    %1311 = vmatpush.xpose.msra.mxu0 0.0
    %1312 = vmatpush.xpose.msra.mxu0 0.0
    %1313 = vmatpush.xpose.msra.mxu0 0.0
    %1314 = vmatpush.xpose.msra.mxu0 0.0
    %1315 = vmatpush.xpose.msra.mxu0 0.0
    %1316 = vmatpush.xpose.msra.mxu0 0.0
    %1317 = vmatpush.xpose.msra.mxu0 0.0
    %1318 = vmatpush.xpose.msra.mxu0 0.0
    %1319 = vmatpush.xpose.msra.mxu0 0.0
    %1320 = vmatpush.xpose.msra.mxu0 0.0
    %1321 = vmatpush.xpose.msra.mxu0 0.0
    %1322 = vmatpush.xpose.msra.mxu0 0.0
    %1323 = vmatpush.xpose.msra.mxu0 0.0
    %1324 = vmatpush.xpose.msra.mxu0 0.0
    %1325 = vmatpush.xpose.msra.mxu0 %v1308
    %1326 = vmatmul.f32.gmra.mxu0 %v1306
    %v1327 = vpop.f32.mrf.mxu0
    %v1328 = vadd.f32 0.0, %v1327
    %1329 = vdwg.mxu0
    %1330 = vrot.lane.b32.xlu0 %v1293, 96
    %v1331 = vpop.permute.xlu0 %1330
    %v1332 = vsel %vm173, %v1293, 0
    %v1334 = vsel %vm173, %v1331, 0
    %1336 = vmatpush.xpose.msra.mxu0 0.0
    %1337 = vmatpush.xpose.msra.mxu0 0.0
    %1338 = vmatpush.xpose.msra.mxu0 0.0
    %1339 = vmatpush.xpose.msra.mxu0 0.0
    %1340 = vmatpush.xpose.msra.mxu0 0.0
    %1341 = vmatpush.xpose.msra.mxu0 0.0
    %1342 = vmatpush.xpose.msra.mxu0 0.0
    %1343 = vmatpush.xpose.msra.mxu0 0.0
    %1344 = vmatpush.xpose.msra.mxu0 0.0
    %1345 = vmatpush.xpose.msra.mxu0 0.0
    %1346 = vmatpush.xpose.msra.mxu0 0.0
    %1347 = vmatpush.xpose.msra.mxu0 0.0
    %1348 = vmatpush.xpose.msra.mxu0 0.0
    %1349 = vmatpush.xpose.msra.mxu0 0.0
    %1350 = vmatpush.xpose.msra.mxu0 0.0
    %1351 = vmatpush.xpose.msra.mxu0 %v1334
    %1352 = vmatmul.f32.gmra.mxu0 %v1332
    %v1353 = vpop.f32.mrf.mxu0
    %v1354 = vadd.f32 0.0, %v1353
    %1355 = vdwg.mxu0
    %1356 = vrot.lane.b32.xlu0 %v1297, 96
    %v1357 = vpop.permute.xlu0 %1356
    %v1358 = vsel %vm173, %v1297, 0
    %v1360 = vsel %vm173, %v1357, 0
    %1362 = vmatpush.xpose.msra.mxu0 0.0
    %1363 = vmatpush.xpose.msra.mxu0 0.0
    %1364 = vmatpush.xpose.msra.mxu0 0.0
    %1365 = vmatpush.xpose.msra.mxu0 0.0
    %1366 = vmatpush.xpose.msra.mxu0 0.0
    %1367 = vmatpush.xpose.msra.mxu0 0.0
    %1368 = vmatpush.xpose.msra.mxu0 0.0
    %1369 = vmatpush.xpose.msra.mxu0 0.0
    %1370 = vmatpush.xpose.msra.mxu0 0.0
    %1371 = vmatpush.xpose.msra.mxu0 0.0
    %1372 = vmatpush.xpose.msra.mxu0 0.0
    %1373 = vmatpush.xpose.msra.mxu0 0.0
    %1374 = vmatpush.xpose.msra.mxu0 0.0
    %1375 = vmatpush.xpose.msra.mxu0 0.0
    %1376 = vmatpush.xpose.msra.mxu0 0.0
    %1377 = vmatpush.xpose.msra.mxu0 %v1360
    %1378 = vmatmul.f32.gmra.mxu0 %v1358
    %v1379 = vpop.f32.mrf.mxu0
    %v1380 = vadd.f32 0.0, %v1379
    %1381 = vdwg.mxu0
    %1382 = vrot.lane.b32.xlu0 %v1301, 96
    %v1383 = vpop.permute.xlu0 %1382
    %v1384 = vsel %vm173, %v1301, 0
    %v1386 = vsel %vm173, %v1383, 0
    %1388 = vmatpush.xpose.msra.mxu0 0.0
    %1389 = vmatpush.xpose.msra.mxu0 0.0
    %1390 = vmatpush.xpose.msra.mxu0 0.0
    %1391 = vmatpush.xpose.msra.mxu0 0.0
    %1392 = vmatpush.xpose.msra.mxu0 0.0
    %1393 = vmatpush.xpose.msra.mxu0 0.0
    %1394 = vmatpush.xpose.msra.mxu0 0.0
    %1395 = vmatpush.xpose.msra.mxu0 0.0
    %1396 = vmatpush.xpose.msra.mxu0 0.0
    %1397 = vmatpush.xpose.msra.mxu0 0.0
    %1398 = vmatpush.xpose.msra.mxu0 0.0
    %1399 = vmatpush.xpose.msra.mxu0 0.0
    %1400 = vmatpush.xpose.msra.mxu0 0.0
    %1401 = vmatpush.xpose.msra.mxu0 0.0
    %1402 = vmatpush.xpose.msra.mxu0 0.0
    %1403 = vmatpush.xpose.msra.mxu0 %v1386
    %1404 = vmatmul.f32.gmra.mxu0 %v1384
    %v1405 = vpop.f32.mrf.mxu0
    %v1406 = vadd.f32 0.0, %v1405
    %1407 = vdwg.mxu0
    %1408 = vrot.lane.b32.xlu0 %v1288, 96
    %v1409 = vpop.permute.xlu0 %1408
    %v1410 = vsel %vm173, %v1288, 0
    %v1412 = vsel %vm173, %v1409, 0
    %1414 = vmatpush.xpose.msra.mxu0 0.0
    %1415 = vmatpush.xpose.msra.mxu0 0.0
    %1416 = vmatpush.xpose.msra.mxu0 0.0
    %1417 = vmatpush.xpose.msra.mxu0 0.0
    %1418 = vmatpush.xpose.msra.mxu0 0.0
    %1419 = vmatpush.xpose.msra.mxu0 0.0
    %1420 = vmatpush.xpose.msra.mxu0 0.0
    %1421 = vmatpush.xpose.msra.mxu0 0.0
    %1422 = vmatpush.xpose.msra.mxu0 0.0
    %1423 = vmatpush.xpose.msra.mxu0 0.0
    %1424 = vmatpush.xpose.msra.mxu0 0.0
    %1425 = vmatpush.xpose.msra.mxu0 0.0
    %1426 = vmatpush.xpose.msra.mxu0 0.0
    %1427 = vmatpush.xpose.msra.mxu0 0.0
    %1428 = vmatpush.xpose.msra.mxu0 0.0
    %1429 = vmatpush.xpose.msra.mxu0 %v1412
    %1430 = vmatmul.f32.gmra.mxu0 %v1410
    %v1431 = vpop.f32.mrf.mxu0
    %v1432 = vadd.f32 0.0, %v1431
    %1433 = vdwg.mxu0
    %1434 = vrot.lane.b32.xlu0 %v1295, 96
    %v1435 = vpop.permute.xlu0 %1434
    %v1436 = vsel %vm173, %v1295, 0
    %v1438 = vsel %vm173, %v1435, 0
    %1440 = vmatpush.xpose.msra.mxu0 0.0
    %1441 = vmatpush.xpose.msra.mxu0 0.0
    %1442 = vmatpush.xpose.msra.mxu0 0.0
    %1443 = vmatpush.xpose.msra.mxu0 0.0
    %1444 = vmatpush.xpose.msra.mxu0 0.0
    %1445 = vmatpush.xpose.msra.mxu0 0.0
    %1446 = vmatpush.xpose.msra.mxu0 0.0
    %1447 = vmatpush.xpose.msra.mxu0 0.0
    %1448 = vmatpush.xpose.msra.mxu0 0.0
    %1449 = vmatpush.xpose.msra.mxu0 0.0
    %1450 = vmatpush.xpose.msra.mxu0 0.0
    %1451 = vmatpush.xpose.msra.mxu0 0.0
    %1452 = vmatpush.xpose.msra.mxu0 0.0
    %1453 = vmatpush.xpose.msra.mxu0 0.0
    %1454 = vmatpush.xpose.msra.mxu0 0.0
    %1455 = vmatpush.xpose.msra.mxu0 %v1438
    %1456 = vmatmul.f32.gmra.mxu0 %v1436
    %v1457 = vpop.f32.mrf.mxu0
    %v1458 = vadd.f32 0.0, %v1457
    %1459 = vdwg.mxu0
    %1460 = vrot.lane.b32.xlu0 %v1299, 96
    %v1461 = vpop.permute.xlu0 %1460
    %v1462 = vsel %vm173, %v1299, 0
    %v1464 = vsel %vm173, %v1461, 0
    %1466 = vmatpush.xpose.msra.mxu0 0.0
    %1467 = vmatpush.xpose.msra.mxu0 0.0
    %1468 = vmatpush.xpose.msra.mxu0 0.0
    %1469 = vmatpush.xpose.msra.mxu0 0.0
    %1470 = vmatpush.xpose.msra.mxu0 0.0
    %1471 = vmatpush.xpose.msra.mxu0 0.0
    %1472 = vmatpush.xpose.msra.mxu0 0.0
    %1473 = vmatpush.xpose.msra.mxu0 0.0
    %1474 = vmatpush.xpose.msra.mxu0 0.0
    %1475 = vmatpush.xpose.msra.mxu0 0.0
    %1476 = vmatpush.xpose.msra.mxu0 0.0
    %1477 = vmatpush.xpose.msra.mxu0 0.0
    %1478 = vmatpush.xpose.msra.mxu0 0.0
    %1479 = vmatpush.xpose.msra.mxu0 0.0
    %1480 = vmatpush.xpose.msra.mxu0 0.0
    %1481 = vmatpush.xpose.msra.mxu0 %v1464
    %1482 = vmatmul.f32.gmra.mxu0 %v1462
    %v1483 = vpop.f32.mrf.mxu0
    %v1484 = vadd.f32 0.0, %v1483
    %1485 = vdwg.mxu0
    %1486 = vrot.lane.b32.xlu0 %v1303, 96
    %v1487 = vpop.permute.xlu0 %1486
    %v1488 = vsel %vm173, %v1303, 0
    %v1490 = vsel %vm173, %v1487, 0
    %1492 = vmatpush.xpose.msra.mxu0 0.0
    %1493 = vmatpush.xpose.msra.mxu0 0.0
    %1494 = vmatpush.xpose.msra.mxu0 0.0
    %1495 = vmatpush.xpose.msra.mxu0 0.0
    %1496 = vmatpush.xpose.msra.mxu0 0.0
    %1497 = vmatpush.xpose.msra.mxu0 0.0
    %1498 = vmatpush.xpose.msra.mxu0 0.0
    %1499 = vmatpush.xpose.msra.mxu0 0.0
    %1500 = vmatpush.xpose.msra.mxu0 0.0
    %1501 = vmatpush.xpose.msra.mxu0 0.0
    %1502 = vmatpush.xpose.msra.mxu0 0.0
    %1503 = vmatpush.xpose.msra.mxu0 0.0
    %1504 = vmatpush.xpose.msra.mxu0 0.0
    %1505 = vmatpush.xpose.msra.mxu0 0.0
    %1506 = vmatpush.xpose.msra.mxu0 0.0
    %1507 = vmatpush.xpose.msra.mxu0 %v1490
    %1508 = vmatmul.f32.gmra.mxu0 %v1488
    %v1509 = vpop.f32.mrf.mxu0
    %v1510 = vadd.f32 0.0, %v1509
    %1511 = vdwg.mxu0
    %v1512 = vsel %vm173, %v1328, -inf
    %1513 = vmax.xlane.f32.xlu0 %v1512
    %v1514 = vpop.xlane.xlu0 %1513
    %v1515 = vsel %vm173, %v1354, -inf
    %1516 = vmax.xlane.f32.xlu0 %v1515
    %v1517 = vpop.xlane.xlu0 %1516
    %v1518 = vsel %vm173, %v1380, -inf
    %1519 = vmax.xlane.f32.xlu0 %v1518
    %v1520 = vpop.xlane.xlu0 %1519
    %v1521 = vsel %vm173, %v1406, -inf
    %1522 = vmax.xlane.f32.xlu0 %v1521
    %v1523 = vpop.xlane.xlu0 %1522
    %v1524 = vsel %vm173, %v1432, -inf
    %1525 = vmax.xlane.f32.xlu0 %v1524
    %v1526 = vpop.xlane.xlu0 %1525
    %v1527 = vsel %vm173, %v1458, -inf
    %1528 = vmax.xlane.f32.xlu0 %v1527
    %v1529 = vpop.xlane.xlu0 %1528
    %v1530 = vsel %vm173, %v1484, -inf
    %1531 = vmax.xlane.f32.xlu0 %v1530
    %v1532 = vpop.xlane.xlu0 %1531
    %v1533 = vsel %vm173, %v1510, -inf
    %1534 = vmax.xlane.f32.xlu0 %v1533
    %v1535 = vpop.xlane.xlu0 %1534
    %v1536 = vsub.f32 %v1328, %v1514
    %v1537 = vsub.f32 %v1354, %v1517
    %v1538 = vsub.f32 %v1380, %v1520
    %v1539 = vsub.f32 %v1406, %v1523
    %v1540 = vsub.f32 %v1432, %v1526
    %v1541 = vsub.f32 %v1458, %v1529
    %v1542 = vsub.f32 %v1484, %v1532
    %v1543 = vsub.f32 %v1510, %v1535
    %v1544 = vmul.f32 %v1536, 1.442695
    %v1545 = vpow.pop %v1544
    %v1546 = vmul.f32 %v1537, 1.442695
    %v1547 = vpow.pop %v1546
    %v1548 = vmul.f32 %v1538, 1.442695
    %v1549 = vpow.pop %v1548
    %v1550 = vmul.f32 %v1539, 1.442695
    %v1551 = vpow.pop %v1550
    %v1552 = vmul.f32 %v1540, 1.442695
    %v1553 = vpow.pop %v1552
    %v1554 = vmul.f32 %v1541, 1.442695
    %v1555 = vpow.pop %v1554
    %v1556 = vmul.f32 %v1542, 1.442695
    %v1557 = vpow.pop %v1556
    %v1558 = vmul.f32 %v1543, 1.442695
    %v1559 = vpow.pop %v1558
    %v1560 = vsel %vm173, %v1545, 0.0
    %1561 = vadd.xlane.f32.xlu0 %v1560
    %v1562 = vpop.xlane.xlu0 %1561
    %v1563 = vsel %vm173, %v1547, 0.0
    %1564 = vadd.xlane.f32.xlu0 %v1563
    %v1565 = vpop.xlane.xlu0 %1564
    %v1566 = vsel %vm173, %v1549, 0.0
    %1567 = vadd.xlane.f32.xlu0 %v1566
    %v1568 = vpop.xlane.xlu0 %1567
    %v1569 = vsel %vm173, %v1551, 0.0
    %1570 = vadd.xlane.f32.xlu0 %v1569
    %v1571 = vpop.xlane.xlu0 %1570
    %v1572 = vsel %vm173, %v1553, 0.0
    %1573 = vadd.xlane.f32.xlu0 %v1572
    %v1574 = vpop.xlane.xlu0 %1573
    %v1575 = vsel %vm173, %v1555, 0.0
    %1576 = vadd.xlane.f32.xlu0 %v1575
    %v1577 = vpop.xlane.xlu0 %1576
    %v1578 = vsel %vm173, %v1557, 0.0
    %1579 = vadd.xlane.f32.xlu0 %v1578
    %v1580 = vpop.xlane.xlu0 %1579
    %v1581 = vsel %vm173, %v1559, 0.0
    %1582 = vadd.xlane.f32.xlu0 %v1581
    %v1583 = vpop.xlane.xlu0 %1582
    %v1584 = vrcp.pop %v1562
    %v1585 = vmul.f32 %v1562, %v1584
    %v1586 = vsub.f32 1.0, %v1585
    %v1587 = vmul.f32 %v1584, %v1586
    %v1588 = vadd.f32 %v1584, %v1587
    %vm1589 = vweird.f32 %v1562
    %vm1590 = vweird.f32 %v1584
    %vm1591 = vmor %vm1589, %vm1590
    %v1592 = vsel %vm1591, %v1584, %v1588
    %v1593 = vand.u32 2147483647, %v1562
    %vm1594 = vcmp.eq.f32.partialorder %v1593, 8.507059e+37
    %v1595 = vand.u32 %v1562, 2147483648
    %v1596 = vor.u32 1.1754944e-38, %v1595
    %v1597 = vsel %vm1594, %v1596, %v1592
    %v1598 = vmul.f32 %v1545, %v1597
    %v1599 = vrcp.pop %v1565
    %v1600 = vmul.f32 %v1565, %v1599
    %v1601 = vsub.f32 1.0, %v1600
    %v1602 = vmul.f32 %v1599, %v1601
    %v1603 = vadd.f32 %v1599, %v1602
    %vm1604 = vweird.f32 %v1565
    %vm1605 = vweird.f32 %v1599
    %vm1606 = vmor %vm1604, %vm1605
    %v1607 = vsel %vm1606, %v1599, %v1603
    %v1608 = vand.u32 2147483647, %v1565
    %vm1609 = vcmp.eq.f32.partialorder %v1608, 8.507059e+37
    %v1610 = vand.u32 %v1565, 2147483648
    %v1611 = vor.u32 1.1754944e-38, %v1610
    %v1612 = vsel %vm1609, %v1611, %v1607
    %v1613 = vmul.f32 %v1547, %v1612
    %v1614 = vrcp.pop %v1568
    %v1615 = vmul.f32 %v1568, %v1614
    %v1616 = vsub.f32 1.0, %v1615
    %v1617 = vmul.f32 %v1614, %v1616
    %v1618 = vadd.f32 %v1614, %v1617
    %vm1619 = vweird.f32 %v1568
    %vm1620 = vweird.f32 %v1614
    %vm1621 = vmor %vm1619, %vm1620
    %v1622 = vsel %vm1621, %v1614, %v1618
    %v1623 = vand.u32 2147483647, %v1568
    %vm1624 = vcmp.eq.f32.partialorder %v1623, 8.507059e+37
    %v1625 = vand.u32 %v1568, 2147483648
    %v1626 = vor.u32 1.1754944e-38, %v1625
    %v1627 = vsel %vm1624, %v1626, %v1622
    %v1628 = vmul.f32 %v1549, %v1627
    %v1629 = vrcp.pop %v1571
    %v1630 = vmul.f32 %v1571, %v1629
    %v1631 = vsub.f32 1.0, %v1630
    %v1632 = vmul.f32 %v1629, %v1631
    %v1633 = vadd.f32 %v1629, %v1632
    %vm1634 = vweird.f32 %v1571
    %vm1635 = vweird.f32 %v1629
    %vm1636 = vmor %vm1634, %vm1635
    %v1637 = vsel %vm1636, %v1629, %v1633
    %v1638 = vand.u32 2147483647, %v1571
    %vm1639 = vcmp.eq.f32.partialorder %v1638, 8.507059e+37
    %v1640 = vand.u32 %v1571, 2147483648
    %v1641 = vor.u32 1.1754944e-38, %v1640
    %v1642 = vsel %vm1639, %v1641, %v1637
    %v1643 = vmul.f32 %v1551, %v1642
    %v1644 = vrcp.pop %v1574
    %v1645 = vmul.f32 %v1574, %v1644
    %v1646 = vsub.f32 1.0, %v1645
    %v1647 = vmul.f32 %v1644, %v1646
    %v1648 = vadd.f32 %v1644, %v1647
    %vm1649 = vweird.f32 %v1574
    %vm1650 = vweird.f32 %v1644
    %vm1651 = vmor %vm1649, %vm1650
    %v1652 = vsel %vm1651, %v1644, %v1648
    %v1653 = vand.u32 2147483647, %v1574
    %vm1654 = vcmp.eq.f32.partialorder %v1653, 8.507059e+37
    %v1655 = vand.u32 %v1574, 2147483648
    %v1656 = vor.u32 1.1754944e-38, %v1655
    %v1657 = vsel %vm1654, %v1656, %v1652
    %v1658 = vmul.f32 %v1553, %v1657
    %v1659 = vrcp.pop %v1577
    %v1660 = vmul.f32 %v1577, %v1659
    %v1661 = vsub.f32 1.0, %v1660
    %v1662 = vmul.f32 %v1659, %v1661
    %v1663 = vadd.f32 %v1659, %v1662
    %vm1664 = vweird.f32 %v1577
    %vm1665 = vweird.f32 %v1659
    %vm1666 = vmor %vm1664, %vm1665
    %v1667 = vsel %vm1666, %v1659, %v1663
    %v1668 = vand.u32 2147483647, %v1577
    %vm1669 = vcmp.eq.f32.partialorder %v1668, 8.507059e+37
    %v1670 = vand.u32 %v1577, 2147483648
    %v1671 = vor.u32 1.1754944e-38, %v1670
    %v1672 = vsel %vm1669, %v1671, %v1667
    %v1673 = vmul.f32 %v1555, %v1672
    %v1674 = vrcp.pop %v1580
    %v1675 = vmul.f32 %v1580, %v1674
    %v1676 = vsub.f32 1.0, %v1675
    %v1677 = vmul.f32 %v1674, %v1676
    %v1678 = vadd.f32 %v1674, %v1677
    %vm1679 = vweird.f32 %v1580
    %vm1680 = vweird.f32 %v1674
    %vm1681 = vmor %vm1679, %vm1680
    %v1682 = vsel %vm1681, %v1674, %v1678
    %v1683 = vand.u32 2147483647, %v1580
    %vm1684 = vcmp.eq.f32.partialorder %v1683, 8.507059e+37
    %v1685 = vand.u32 %v1580, 2147483648
    %v1686 = vor.u32 1.1754944e-38, %v1685
    %v1687 = vsel %vm1684, %v1686, %v1682
    %v1688 = vmul.f32 %v1557, %v1687
    %v1689 = vrcp.pop %v1583
    %v1690 = vmul.f32 %v1583, %v1689
    %v1691 = vsub.f32 1.0, %v1690
    %v1692 = vmul.f32 %v1689, %v1691
    %v1693 = vadd.f32 %v1689, %v1692
    %vm1694 = vweird.f32 %v1583
    %vm1695 = vweird.f32 %v1689
    %vm1696 = vmor %vm1694, %vm1695
    %v1697 = vsel %vm1696, %v1689, %v1693
    %v1698 = vand.u32 2147483647, %v1583
    %vm1699 = vcmp.eq.f32.partialorder %v1698, 8.507059e+37
    %v1700 = vand.u32 %v1583, 2147483648
    %v1701 = vor.u32 1.1754944e-38, %v1700
    %v1702 = vsel %vm1699, %v1701, %v1697
    %v1703 = vmul.f32 %v1559, %v1702
    %1704 = vrot.lane.b32.xlu0 %v1285, 64
    %v1705 = vpop.permute.xlu0 %1704
    %v1708 = vsel %vm173, %v1598, 0
    %1710 = vmatpush.msra.mxu0 0.0
    %1711 = vmatpush.msra.mxu0 0.0
    %1712 = vmatpush.msra.mxu0 0.0
    %1713 = vmatpush.msra.mxu0 0.0
    %1714 = vmatpush.msra.mxu0 0.0
    %1715 = vmatpush.msra.mxu0 0.0
    %1716 = vmatpush.msra.mxu0 0.0
    %1717 = vmatpush.msra.mxu0 0.0
    %1718 = vmatpush.msra.mxu0 0.0
    %1719 = vmatpush.msra.mxu0 0.0
    %1720 = vmatpush.msra.mxu0 0.0
    %1721 = vmatpush.msra.mxu0 0.0
    %1722 = vmatpush.msra.mxu0 0.0
    %1723 = vmatpush.msra.mxu0 0.0
    %1724 = vmatpush.msra.mxu0 0.0
    %1725 = vmatpush.msra.mxu0 %v1705
    %1726 = vmatmul.f32.gmra.mxu0 %v1708
    %v1727 = vpop.f32.mrf.mxu0
    %v1728 = vadd.f32 0.0, %v1727
    %1729 = vdwg.mxu0
    %1730 = vrot.lane.b32.xlu0 %v1293, 64
    %v1731 = vpop.permute.xlu0 %1730
    %v1734 = vsel %vm173, %v1613, 0
    %1736 = vmatpush.msra.mxu0 0.0
    %1737 = vmatpush.msra.mxu0 0.0
    %1738 = vmatpush.msra.mxu0 0.0
    %1739 = vmatpush.msra.mxu0 0.0
    %1740 = vmatpush.msra.mxu0 0.0
    %1741 = vmatpush.msra.mxu0 0.0
    %1742 = vmatpush.msra.mxu0 0.0
    %1743 = vmatpush.msra.mxu0 0.0
    %1744 = vmatpush.msra.mxu0 0.0
    %1745 = vmatpush.msra.mxu0 0.0
    %1746 = vmatpush.msra.mxu0 0.0
    %1747 = vmatpush.msra.mxu0 0.0
    %1748 = vmatpush.msra.mxu0 0.0
    %1749 = vmatpush.msra.mxu0 0.0
    %1750 = vmatpush.msra.mxu0 0.0
    %1751 = vmatpush.msra.mxu0 %v1731
    %1752 = vmatmul.f32.gmra.mxu0 %v1734
    %v1753 = vpop.f32.mrf.mxu0
    %v1754 = vadd.f32 0.0, %v1753
    %1755 = vdwg.mxu0
    %1756 = vrot.lane.b32.xlu0 %v1297, 64
    %v1757 = vpop.permute.xlu0 %1756
    %v1760 = vsel %vm173, %v1628, 0
    %1762 = vmatpush.msra.mxu0 0.0
    %1763 = vmatpush.msra.mxu0 0.0
    %1764 = vmatpush.msra.mxu0 0.0
    %1765 = vmatpush.msra.mxu0 0.0
    %1766 = vmatpush.msra.mxu0 0.0
    %1767 = vmatpush.msra.mxu0 0.0
    %1768 = vmatpush.msra.mxu0 0.0
    %1769 = vmatpush.msra.mxu0 0.0
    %1770 = vmatpush.msra.mxu0 0.0
    %1771 = vmatpush.msra.mxu0 0.0
    %1772 = vmatpush.msra.mxu0 0.0
    %1773 = vmatpush.msra.mxu0 0.0
    %1774 = vmatpush.msra.mxu0 0.0
    %1775 = vmatpush.msra.mxu0 0.0
    %1776 = vmatpush.msra.mxu0 0.0
    %1777 = vmatpush.msra.mxu0 %v1757
    %1778 = vmatmul.f32.gmra.mxu0 %v1760
    %v1779 = vpop.f32.mrf.mxu0
    %v1780 = vadd.f32 0.0, %v1779
    %1781 = vdwg.mxu0
    %1782 = vrot.lane.b32.xlu0 %v1301, 64
    %v1783 = vpop.permute.xlu0 %1782
    %v1786 = vsel %vm173, %v1643, 0
    %1788 = vmatpush.msra.mxu0 0.0
    %1789 = vmatpush.msra.mxu0 0.0
    %1790 = vmatpush.msra.mxu0 0.0
    %1791 = vmatpush.msra.mxu0 0.0
    %1792 = vmatpush.msra.mxu0 0.0
    %1793 = vmatpush.msra.mxu0 0.0
    %1794 = vmatpush.msra.mxu0 0.0
    %1795 = vmatpush.msra.mxu0 0.0
    %1796 = vmatpush.msra.mxu0 0.0
    %1797 = vmatpush.msra.mxu0 0.0
    %1798 = vmatpush.msra.mxu0 0.0
    %1799 = vmatpush.msra.mxu0 0.0
    %1800 = vmatpush.msra.mxu0 0.0
    %1801 = vmatpush.msra.mxu0 0.0
    %1802 = vmatpush.msra.mxu0 0.0
    %1803 = vmatpush.msra.mxu0 %v1783
    %1804 = vmatmul.f32.gmra.mxu0 %v1786
    %v1805 = vpop.f32.mrf.mxu0
    %v1806 = vadd.f32 0.0, %v1805
    %1807 = vdwg.mxu0
    %1808 = vrot.lane.b32.xlu0 %v1288, 64
    %v1809 = vpop.permute.xlu0 %1808
    %v1812 = vsel %vm173, %v1658, 0
    %1814 = vmatpush.msra.mxu0 0.0
    %1815 = vmatpush.msra.mxu0 0.0
    %1816 = vmatpush.msra.mxu0 0.0
    %1817 = vmatpush.msra.mxu0 0.0
    %1818 = vmatpush.msra.mxu0 0.0
    %1819 = vmatpush.msra.mxu0 0.0
    %1820 = vmatpush.msra.mxu0 0.0
    %1821 = vmatpush.msra.mxu0 0.0
    %1822 = vmatpush.msra.mxu0 0.0
    %1823 = vmatpush.msra.mxu0 0.0
    %1824 = vmatpush.msra.mxu0 0.0
    %1825 = vmatpush.msra.mxu0 0.0
    %1826 = vmatpush.msra.mxu0 0.0
    %1827 = vmatpush.msra.mxu0 0.0
    %1828 = vmatpush.msra.mxu0 0.0
    %1829 = vmatpush.msra.mxu0 %v1809
    %1830 = vmatmul.f32.gmra.mxu0 %v1812
    %v1831 = vpop.f32.mrf.mxu0
    %v1832 = vadd.f32 0.0, %v1831
    %1833 = vdwg.mxu0
    %1834 = vrot.lane.b32.xlu0 %v1295, 64
    %v1835 = vpop.permute.xlu0 %1834
    %v1838 = vsel %vm173, %v1673, 0
    %1840 = vmatpush.msra.mxu0 0.0
    %1841 = vmatpush.msra.mxu0 0.0
    %1842 = vmatpush.msra.mxu0 0.0
    %1843 = vmatpush.msra.mxu0 0.0
    %1844 = vmatpush.msra.mxu0 0.0
    %1845 = vmatpush.msra.mxu0 0.0
    %1846 = vmatpush.msra.mxu0 0.0
    %1847 = vmatpush.msra.mxu0 0.0
    %1848 = vmatpush.msra.mxu0 0.0
    %1849 = vmatpush.msra.mxu0 0.0
    %1850 = vmatpush.msra.mxu0 0.0
    %1851 = vmatpush.msra.mxu0 0.0
    %1852 = vmatpush.msra.mxu0 0.0
    %1853 = vmatpush.msra.mxu0 0.0
    %1854 = vmatpush.msra.mxu0 0.0
    %1855 = vmatpush.msra.mxu0 %v1835
    %1856 = vmatmul.f32.gmra.mxu0 %v1838
    %v1857 = vpop.f32.mrf.mxu0
    %v1858 = vadd.f32 0.0, %v1857
    %1859 = vdwg.mxu0
    %1860 = vrot.lane.b32.xlu0 %v1299, 64
    %v1861 = vpop.permute.xlu0 %1860
    %v1864 = vsel %vm173, %v1688, 0
    %1866 = vmatpush.msra.mxu0 0.0
    %1867 = vmatpush.msra.mxu0 0.0
    %1868 = vmatpush.msra.mxu0 0.0
    %1869 = vmatpush.msra.mxu0 0.0
    %1870 = vmatpush.msra.mxu0 0.0
    %1871 = vmatpush.msra.mxu0 0.0
    %1872 = vmatpush.msra.mxu0 0.0
    %1873 = vmatpush.msra.mxu0 0.0
    %1874 = vmatpush.msra.mxu0 0.0
    %1875 = vmatpush.msra.mxu0 0.0
    %1876 = vmatpush.msra.mxu0 0.0
    %1877 = vmatpush.msra.mxu0 0.0
    %1878 = vmatpush.msra.mxu0 0.0
    %1879 = vmatpush.msra.mxu0 0.0
    %1880 = vmatpush.msra.mxu0 0.0
    %1881 = vmatpush.msra.mxu0 %v1861
    %1882 = vmatmul.f32.gmra.mxu0 %v1864
    %v1883 = vpop.f32.mrf.mxu0
    %v1884 = vadd.f32 0.0, %v1883
    %1885 = vdwg.mxu0
    %1886 = vrot.lane.b32.xlu0 %v1303, 64
    %v1887 = vpop.permute.xlu0 %1886
    %v1890 = vsel %vm173, %v1703, 0
    %1892 = vmatpush.msra.mxu0 0.0
    %1893 = vmatpush.msra.mxu0 0.0
    %1894 = vmatpush.msra.mxu0 0.0
    %1895 = vmatpush.msra.mxu0 0.0
    %1896 = vmatpush.msra.mxu0 0.0
    %1897 = vmatpush.msra.mxu0 0.0
    %1898 = vmatpush.msra.mxu0 0.0
    %1899 = vmatpush.msra.mxu0 0.0
    %1900 = vmatpush.msra.mxu0 0.0
    %1901 = vmatpush.msra.mxu0 0.0
    %1902 = vmatpush.msra.mxu0 0.0
    %1903 = vmatpush.msra.mxu0 0.0
    %1904 = vmatpush.msra.mxu0 0.0
    %1905 = vmatpush.msra.mxu0 0.0
    %1906 = vmatpush.msra.mxu0 0.0
    %1907 = vmatpush.msra.mxu0 %v1887
    %1908 = vmatmul.f32.gmra.mxu0 %v1890
    %v1909 = vpop.f32.mrf.mxu0
    %v1910 = vadd.f32 0.0, %v1909
    %1911 = vdwg.mxu0
    %v1912 = vld [vmem:[%s1255 + $0x20] sm:$0xff]
    %v1913 = vld [vmem:[%s1255 + $0x28] sm:$0xff]
    %v1914 = vld [vmem:[%s1255 + $0x30] sm:$0xff]
    %v1915 = vld [vmem:[%s1255 + $0x38] sm:$0xff]
    %v1917 = vsel %vm173, %v1728, 0
    %1919 = vmatpush.msra.mxu0 0.0
    %1920 = vmatpush.msra.mxu0 0.0
    %1921 = vmatpush.msra.mxu0 0.0
    %1922 = vmatpush.msra.mxu0 0.0
    %1923 = vmatpush.msra.mxu0 0.0
    %1924 = vmatpush.msra.mxu0 0.0
    %1925 = vmatpush.msra.mxu0 0.0
    %1926 = vmatpush.msra.mxu0 0.0
    %1927 = vmatpush.msra.mxu0 0.0
    %1928 = vmatpush.msra.mxu0 0.0
    %1929 = vmatpush.msra.mxu0 0.0
    %1930 = vmatpush.msra.mxu0 0.0
    %1931 = vmatpush.msra.mxu0 0.0
    %1932 = vmatpush.msra.mxu0 0.0
    %1933 = vmatpush.msra.mxu0 0.0
    %1934 = vmatpush.msra.mxu0 %v1912
    %1935 = vmatmul.f32.gmra.mxu0 %v1917
    %v1936 = vpop.f32.mrf.mxu0
    %v1937 = vadd.f32 0.0, %v1936
    %1938 = vdwg.mxu0
    %v1940 = vsel %vm173, %v1754, 0
    %1942 = vmatpush.msra.mxu0 0.0
    %1943 = vmatpush.msra.mxu0 0.0
    %1944 = vmatpush.msra.mxu0 0.0
    %1945 = vmatpush.msra.mxu0 0.0
    %1946 = vmatpush.msra.mxu0 0.0
    %1947 = vmatpush.msra.mxu0 0.0
    %1948 = vmatpush.msra.mxu0 0.0
    %1949 = vmatpush.msra.mxu0 0.0
    %1950 = vmatpush.msra.mxu0 0.0
    %1951 = vmatpush.msra.mxu0 0.0
    %1952 = vmatpush.msra.mxu0 0.0
    %1953 = vmatpush.msra.mxu0 0.0
    %1954 = vmatpush.msra.mxu0 0.0
    %1955 = vmatpush.msra.mxu0 0.0
    %1956 = vmatpush.msra.mxu0 0.0
    %1957 = vmatpush.msra.mxu0 %v1913
    %1958 = vmatmul.f32.gmra.mxu0 %v1940
    %v1959 = vpop.f32.mrf.mxu0
    %v1960 = vadd.f32 0.0, %v1959
    %1961 = vdwg.mxu0
    %v1963 = vsel %vm173, %v1780, 0
    %1965 = vmatpush.msra.mxu0 0.0
    %1966 = vmatpush.msra.mxu0 0.0
    %1967 = vmatpush.msra.mxu0 0.0
    %1968 = vmatpush.msra.mxu0 0.0
    %1969 = vmatpush.msra.mxu0 0.0
    %1970 = vmatpush.msra.mxu0 0.0
    %1971 = vmatpush.msra.mxu0 0.0
    %1972 = vmatpush.msra.mxu0 0.0
    %1973 = vmatpush.msra.mxu0 0.0
    %1974 = vmatpush.msra.mxu0 0.0
    %1975 = vmatpush.msra.mxu0 0.0
    %1976 = vmatpush.msra.mxu0 0.0
    %1977 = vmatpush.msra.mxu0 0.0
    %1978 = vmatpush.msra.mxu0 0.0
    %1979 = vmatpush.msra.mxu0 0.0
    %1980 = vmatpush.msra.mxu0 %v1914
    %1981 = vmatmul.f32.gmra.mxu0 %v1963
    %v1982 = vpop.f32.mrf.mxu0
    %v1983 = vadd.f32 0.0, %v1982
    %1984 = vdwg.mxu0
    %v1986 = vsel %vm173, %v1806, 0
    %1988 = vmatpush.msra.mxu0 0.0
    %1989 = vmatpush.msra.mxu0 0.0
    %1990 = vmatpush.msra.mxu0 0.0
    %1991 = vmatpush.msra.mxu0 0.0
    %1992 = vmatpush.msra.mxu0 0.0
    %1993 = vmatpush.msra.mxu0 0.0
    %1994 = vmatpush.msra.mxu0 0.0
    %1995 = vmatpush.msra.mxu0 0.0
    %1996 = vmatpush.msra.mxu0 0.0
    %1997 = vmatpush.msra.mxu0 0.0
    %1998 = vmatpush.msra.mxu0 0.0
    %1999 = vmatpush.msra.mxu0 0.0
    %2000 = vmatpush.msra.mxu0 0.0
    %2001 = vmatpush.msra.mxu0 0.0
    %2002 = vmatpush.msra.mxu0 0.0
    %2003 = vmatpush.msra.mxu0 %v1915
    %2004 = vmatmul.f32.gmra.mxu0 %v1986
    %v2005 = vpop.f32.mrf.mxu0
    %v2006 = vadd.f32 0.0, %v2005
    %2007 = vdwg.mxu0
    %v2009 = vsel %vm173, %v1832, 0
    %2011 = vmatpush.msra.mxu0 0.0
    %2012 = vmatpush.msra.mxu0 0.0
    %2013 = vmatpush.msra.mxu0 0.0
    %2014 = vmatpush.msra.mxu0 0.0
    %2015 = vmatpush.msra.mxu0 0.0
    %2016 = vmatpush.msra.mxu0 0.0
    %2017 = vmatpush.msra.mxu0 0.0
    %2018 = vmatpush.msra.mxu0 0.0
    %2019 = vmatpush.msra.mxu0 0.0
    %2020 = vmatpush.msra.mxu0 0.0
    %2021 = vmatpush.msra.mxu0 0.0
    %2022 = vmatpush.msra.mxu0 0.0
    %2023 = vmatpush.msra.mxu0 0.0
    %2024 = vmatpush.msra.mxu0 0.0
    %2025 = vmatpush.msra.mxu0 0.0
    %2026 = vmatpush.msra.mxu0 %v1912
    %2027 = vmatmul.f32.gmra.mxu0 %v2009
    %v2028 = vpop.f32.mrf.mxu0
    %v2029 = vadd.f32 0.0, %v2028
    %2030 = vdwg.mxu0
    %v2032 = vsel %vm173, %v1858, 0
    %2034 = vmatpush.msra.mxu0 0.0
    %2035 = vmatpush.msra.mxu0 0.0
    %2036 = vmatpush.msra.mxu0 0.0
    %2037 = vmatpush.msra.mxu0 0.0
    %2038 = vmatpush.msra.mxu0 0.0
    %2039 = vmatpush.msra.mxu0 0.0
    %2040 = vmatpush.msra.mxu0 0.0
    %2041 = vmatpush.msra.mxu0 0.0
    %2042 = vmatpush.msra.mxu0 0.0
    %2043 = vmatpush.msra.mxu0 0.0
    %2044 = vmatpush.msra.mxu0 0.0
    %2045 = vmatpush.msra.mxu0 0.0
    %2046 = vmatpush.msra.mxu0 0.0
    %2047 = vmatpush.msra.mxu0 0.0
    %2048 = vmatpush.msra.mxu0 0.0
    %2049 = vmatpush.msra.mxu0 %v1913
    %2050 = vmatmul.f32.gmra.mxu0 %v2032
    %v2051 = vpop.f32.mrf.mxu0
    %v2052 = vadd.f32 0.0, %v2051
    %2053 = vdwg.mxu0
    %v2055 = vsel %vm173, %v1884, 0
    %2057 = vmatpush.msra.mxu0 0.0
    %2058 = vmatpush.msra.mxu0 0.0
    %2059 = vmatpush.msra.mxu0 0.0
    %2060 = vmatpush.msra.mxu0 0.0
    %2061 = vmatpush.msra.mxu0 0.0
    %2062 = vmatpush.msra.mxu0 0.0
    %2063 = vmatpush.msra.mxu0 0.0
    %2064 = vmatpush.msra.mxu0 0.0
    %2065 = vmatpush.msra.mxu0 0.0
    %2066 = vmatpush.msra.mxu0 0.0
    %2067 = vmatpush.msra.mxu0 0.0
    %2068 = vmatpush.msra.mxu0 0.0
    %2069 = vmatpush.msra.mxu0 0.0
    %2070 = vmatpush.msra.mxu0 0.0
    %2071 = vmatpush.msra.mxu0 0.0
    %2072 = vmatpush.msra.mxu0 %v1914
    %2073 = vmatmul.f32.gmra.mxu0 %v2055
    %v2074 = vpop.f32.mrf.mxu0
    %v2075 = vadd.f32 0.0, %v2074
    %2076 = vdwg.mxu0
    %v2078 = vsel %vm173, %v1910, 0
    %2080 = vmatpush.msra.mxu0 0.0
    %2081 = vmatpush.msra.mxu0 0.0
    %2082 = vmatpush.msra.mxu0 0.0
    %2083 = vmatpush.msra.mxu0 0.0
    %2084 = vmatpush.msra.mxu0 0.0
    %2085 = vmatpush.msra.mxu0 0.0
    %2086 = vmatpush.msra.mxu0 0.0
    %2087 = vmatpush.msra.mxu0 0.0
    %2088 = vmatpush.msra.mxu0 0.0
    %2089 = vmatpush.msra.mxu0 0.0
    %2090 = vmatpush.msra.mxu0 0.0
    %2091 = vmatpush.msra.mxu0 0.0
    %2092 = vmatpush.msra.mxu0 0.0
    %2093 = vmatpush.msra.mxu0 0.0
    %2094 = vmatpush.msra.mxu0 0.0
    %2095 = vmatpush.msra.mxu0 %v1915
    %2096 = vmatmul.f32.gmra.mxu0 %v2078
    %v2097 = vpop.f32.mrf.mxu0
    %v2098 = vadd.f32 0.0, %v2097
    %2099 = vdwg.mxu0
    %v2100 = vsel %vm65, %v1937, 0.0
    %v2101 = vsel %vm65, %v1960, 0.0
    %v2102 = vadd.f32 %v2100, %v2101
    %v2103 = vsel %vm65, %v1983, 0.0
    %v2104 = vadd.f32 %v2102, %v2103
    %v2105 = vsel %vm65, %v2006, 0.0
    %v2106 = vadd.f32 %v2104, %v2105
    %v2107 = vsel %vm65, %v2029, 0.0
    %v2108 = vsel %vm65, %v2052, 0.0
    %v2109 = vadd.f32 %v2107, %v2108
    %v2110 = vsel %vm65, %v2075, 0.0
    %v2111 = vadd.f32 %v2109, %v2110
    %v2112 = vsel %vm65, %v2098, 0.0
    %v2113 = vadd.f32 %v2111, %v2112
    %v2114 = vperm.slane %v1204, 1
    %v2115 = vadd.f32 %v2106, %v2114
    %v2116 = vadd.f32 %v2113, %v2114
    %v2117 = vadd.f32 %v1201, %v2115
    %v2118 = vadd.f32 %v1202, %v2116
    %v2119 = vsel %vm65, %v2117, 0.0
    %2120 = vadd.xlane.f32.xlu0 %v2119
    %v2121 = vpop.xlane.xlu0 %2120
    %v2122 = vsel %vm65, %v2118, 0.0
    %2123 = vadd.xlane.f32.xlu0 %v2122
    %v2124 = vpop.xlane.xlu0 %2123
    %v2125 = vmul.f32 %v2121, %v78
    %v2126 = vmul.f32 %v2124, %v78
    %v2127 = vsub.f32 %v2117, %v2125
    %v2128 = vsub.f32 %v2118, %v2126
    %v2129 = vmul.f32 %v2127, %v2127
    %v2130 = vmul.f32 %v2128, %v2128
    %v2131 = vsel %vm65, %v2129, 0.0
    %2132 = vadd.xlane.f32.xlu0 %v2131
    %v2133 = vpop.xlane.xlu0 %2132
    %v2134 = vsel %vm65, %v2130, 0.0
    %2135 = vadd.xlane.f32.xlu0 %v2134
    %v2136 = vpop.xlane.xlu0 %2135
    %v2137 = vmul.f32 %v2133, %v78
    %v2138 = vmul.f32 %v2136, %v78
    %v2139 = vadd.f32 %v2137, 1e-05
    %v2140 = vadd.f32 %v2138, 1e-05
    %v2141 = vrsqrt.pop %v2139
    %v2142 = vmul.f32 %v2141, %v2139
    %v2143 = vmul.f32 %v2142, %v2141
    %v2144 = vmul.f32 0.5, %v2143
    %v2145 = vsub.f32 1.5, %v2144
    %v2146 = vmul.f32 %v2141, %v2145
    %vm2147 = vweird.f32 %v2139
    %vm2148 = vweird.f32 %v2141
    %vm2149 = vmor %vm2147, %vm2148
    %v2150 = vsel %vm2149, %v2141, %v2146
    %v2151 = vrsqrt.pop %v2140
    %v2152 = vmul.f32 %v2151, %v2140
    %v2153 = vmul.f32 %v2152, %v2151
    %v2154 = vmul.f32 0.5, %v2153
    %v2155 = vsub.f32 1.5, %v2154
    %v2156 = vmul.f32 %v2151, %v2155
    %vm2157 = vweird.f32 %v2140
    %vm2158 = vweird.f32 %v2151
    %vm2159 = vmor %vm2157, %vm2158
    %v2160 = vsel %vm2159, %v2151, %v2156
    %v2161 = vmul.f32 %v2127, %v2150
    %v2162 = vmul.f32 %v2128, %v2160
    %v2163 = vperm.slane %v1204, 6
    %v2164 = vmul.f32 %v2161, %v2163
    %v2165 = vmul.f32 %v2162, %v2163
    %v2166 = vperm.slane %v1204, 7
    %v2167 = vadd.f32 %v2164, %v2166
    %v2168 = vadd.f32 %v2165, %v2166
    %v2169 = vld [vmem:[%s1255 + $0x40] sm:$0xff]
    %v2170 = vld [vmem:[%s1255 + $0x48] sm:$0xff]
    %v2171 = vld [vmem:[%s1255 + $0x50] sm:$0xff]
    %v2172 = vld [vmem:[%s1255 + $0x58] sm:$0xff]
    %v2173 = vperm.slane %v1204, 2
    %v2175 = vsel %vm65, %v2167, 0
    %v2178 = vsel %vm65, %v2168, 0
    %2180 = vmatpush.msra.mxu0 0.0
    %2181 = vmatpush.msra.mxu0 0.0
    %2182 = vmatpush.msra.mxu0 0.0
    %2183 = vmatpush.msra.mxu0 0.0
    %2184 = vmatpush.msra.mxu0 0.0
    %2185 = vmatpush.msra.mxu0 0.0
    %2186 = vmatpush.msra.mxu0 0.0
    %2187 = vmatpush.msra.mxu0 0.0
    %2188 = vmatpush.msra.mxu0 0.0
    %2189 = vmatpush.msra.mxu0 0.0
    %2190 = vmatpush.msra.mxu0 0.0
    %2191 = vmatpush.msra.mxu0 0.0
    %2192 = vmatpush.msra.mxu0 %v2172
    %2193 = vmatpush.msra.mxu0 %v2171
    %2194 = vmatpush.msra.mxu0 %v2170
    %2195 = vmatpush.msra.mxu0 %v2169
    %2196 = vmatmul.f32.gmra.mxu0 %v2175
    %v2197 = vpop.f32.mrf.mxu0
    %v2198 = vadd.f32 %v2173, %v2197
    %2199 = vmatmul.f32.gmra.mxu0 %v2178
    %v2200 = vpop.f32.mrf.mxu0
    %v2201 = vadd.f32 %v2173, %v2200
    %2202 = vdwg.mxu0
    %v2203 = vmul.f32 %v2198, 0.5
    %v2204 = vmul.f32 %v2201, 0.5
    %v2205 = vmul.f32 %v2198, 0.70710677
    %v2206 = vmul.f32 %v2201, 0.70710677
    %v2207 = vmul.f32 %v2205, %v2205
    %v2208 = vmin.f32 16.0, %v2207
    %v2209 = vmul.f32 %v2208, 2.1237322e-06
    %v2210 = vadd.f32 %v2209, 0.00028619796
    %v2211 = vmul.f32 %v2208, %v2210
    %v2212 = vadd.f32 %v2211, 0.0036580483
    %v2213 = vmul.f32 %v2208, %v2212
    %v2214 = vadd.f32 %v2213, 0.05243302
    %v2215 = vmul.f32 %v2208, %v2214
    %v2216 = vadd.f32 %v2215, 0.18741608
    %v2217 = vmul.f32 %v2208, %v2216
    %v2218 = vadd.f32 %v2217, 1.1283791
    %v2219 = vmul.f32 %v2205, %v2218
    %v2220 = vmul.f32 %v2208, 3.8918573e-05
    %v2221 = vadd.f32 %v2220, 0.001143296
    %v2222 = vmul.f32 %v2208, %v2221
    %v2223 = vadd.f32 %v2222, 0.014752088
    %v2224 = vmul.f32 %v2208, %v2223
    %v2225 = vadd.f32 %v2224, 0.112945676
    %v2226 = vmul.f32 %v2208, %v2225
    %v2227 = vadd.f32 %v2226, 0.4994258
    %v2228 = vmul.f32 %v2208, %v2227
    %v2229 = vadd.f32 %v2228, 1.0
    %v2230 = vrcp.pop %v2229
    %v2231 = vmul.f32 %v2229, %v2230
    %v2232 = vsub.f32 1.0, %v2231
    %v2233 = vmul.f32 %v2230, %v2232
    %v2234 = vadd.f32 %v2230, %v2233
    %vm2235 = vweird.f32 %v2229
    %vm2236 = vweird.f32 %v2230
    %vm2237 = vmor %vm2235, %vm2236
    %v2238 = vsel %vm2237, %v2230, %v2234
    %v2239 = vand.u32 2147483647, %v2229
    %vm2240 = vcmp.eq.f32.partialorder %v2239, 8.507059e+37
    %v2241 = vand.u32 %v2229, 2147483648
    %v2242 = vor.u32 1.1754944e-38, %v2241
    %v2243 = vsel %vm2240, %v2242, %v2238
    %v2244 = vmul.f32 %v2219, %v2243
    %v2245 = vmin.f32 %v2244, 1.0
    %v2246 = vmax.f32 %v2245, -1.0
    %v2247 = vmul.f32 %v2206, %v2206
    %v2248 = vmin.f32 16.0, %v2247
    %v2249 = vmul.f32 %v2248, 2.1237322e-06
    %v2250 = vadd.f32 %v2249, 0.00028619796
    %v2251 = vmul.f32 %v2248, %v2250
    %v2252 = vadd.f32 %v2251, 0.0036580483
    %v2253 = vmul.f32 %v2248, %v2252
    %v2254 = vadd.f32 %v2253, 0.05243302
    %v2255 = vmul.f32 %v2248, %v2254
    %v2256 = vadd.f32 %v2255, 0.18741608
    %v2257 = vmul.f32 %v2248, %v2256
    %v2258 = vadd.f32 %v2257, 1.1283791
    %v2259 = vmul.f32 %v2206, %v2258
    %v2260 = vmul.f32 %v2248, 3.8918573e-05
    %v2261 = vadd.f32 %v2260, 0.001143296
    %v2262 = vmul.f32 %v2248, %v2261
    %v2263 = vadd.f32 %v2262, 0.014752088
    %v2264 = vmul.f32 %v2248, %v2263
    %v2265 = vadd.f32 %v2264, 0.112945676
    %v2266 = vmul.f32 %v2248, %v2265
    %v2267 = vadd.f32 %v2266, 0.4994258
    %v2268 = vmul.f32 %v2248, %v2267
    %v2269 = vadd.f32 %v2268, 1.0
    %v2270 = vrcp.pop %v2269
    %v2271 = vmul.f32 %v2269, %v2270
    %v2272 = vsub.f32 1.0, %v2271
    %v2273 = vmul.f32 %v2270, %v2272
    %v2274 = vadd.f32 %v2270, %v2273
    %vm2275 = vweird.f32 %v2269
    %vm2276 = vweird.f32 %v2270
    %vm2277 = vmor %vm2275, %vm2276
    %v2278 = vsel %vm2277, %v2270, %v2274
    %v2279 = vand.u32 2147483647, %v2269
    %vm2280 = vcmp.eq.f32.partialorder %v2279, 8.507059e+37
    %v2281 = vand.u32 %v2269, 2147483648
    %v2282 = vor.u32 1.1754944e-38, %v2281
    %v2283 = vsel %vm2280, %v2282, %v2278
    %v2284 = vmul.f32 %v2259, %v2283
    %v2285 = vmin.f32 %v2284, 1.0
    %v2286 = vmax.f32 %v2285, -1.0
    %v2287 = vadd.f32 %v2246, 1.0
    %v2288 = vadd.f32 %v2286, 1.0
    %v2289 = vmul.f32 %v2203, %v2287
    %v2290 = vmul.f32 %v2204, %v2288
    %v2291 = vld [vmem:[%s1255 + $0x60] sm:$0xff]
    %v2292 = vld [vmem:[%s1255 + $0x68] sm:$0xff]
    %v2293 = vld [vmem:[%s1255 + $0x70] sm:$0xff]
    %v2294 = vld [vmem:[%s1255 + $0x78] sm:$0xff]
    %v2295 = vld [vmem:[%s1255 + $0x80] sm:$0xff]
    %v2296 = vld [vmem:[%s1255 + $0x88] sm:$0xff]
    %v2297 = vld [vmem:[%s1255 + $0x90] sm:$0xff]
    %v2298 = vld [vmem:[%s1255 + $0x98] sm:$0xff]
    %v2299 = vld [vmem:[%s1255 + $0xa0] sm:$0xff]
    %v2300 = vld [vmem:[%s1255 + $0xa8] sm:$0xff]
    %v2301 = vld [vmem:[%s1255 + $0xb0] sm:$0xff]
    %v2302 = vld [vmem:[%s1255 + $0xb8] sm:$0xff]
    %v2303 = vld [vmem:[%s1255 + $0xc0] sm:$0xff]
    %v2304 = vld [vmem:[%s1255 + $0xc8] sm:$0xff]
    %v2305 = vld [vmem:[%s1255 + $0xd0] sm:$0xff]
    %v2306 = vld [vmem:[%s1255 + $0xd8] sm:$0xff]
    %2307 = vmatpush.msra.mxu0 %v2306
    %2308 = vmatpush.msra.mxu0 %v2305
    %2309 = vmatpush.msra.mxu0 %v2304
    %2310 = vmatpush.msra.mxu0 %v2303
    %2311 = vmatpush.msra.mxu0 %v2302
    %2312 = vmatpush.msra.mxu0 %v2301
    %2313 = vmatpush.msra.mxu0 %v2300
    %2314 = vmatpush.msra.mxu0 %v2299
    %2315 = vmatpush.msra.mxu0 %v2298
    %2316 = vmatpush.msra.mxu0 %v2297
    %2317 = vmatpush.msra.mxu0 %v2296
    %2318 = vmatpush.msra.mxu0 %v2295
    %2319 = vmatpush.msra.mxu0 %v2294
    %2320 = vmatpush.msra.mxu0 %v2293
    %2321 = vmatpush.msra.mxu0 %v2292
    %2322 = vmatpush.msra.mxu0 %v2291
    %2323 = vmatmul.f32.gmra.mxu0 %v2289
    %v2324 = vpop.f32.mrf.mxu0
    %v2325 = vadd.f32 0.0, %v2324
    %2326 = vmatmul.f32.gmra.mxu0 %v2290
    %v2327 = vpop.f32.mrf.mxu0
    %v2328 = vadd.f32 0.0, %v2327
    %2329 = vdwg.mxu0
    %v2330 = vadd.f32 %v2117, %v2325
    %v2331 = vadd.f32 %v2118, %v2328
    %v2332 = vperm.slane %v1204, 3
    %v2333 = vadd.f32 %v2330, %v2332
    %v2334 = vadd.f32 %v2331, %v2332
    %s2335 = scalar_lea.vmem [#allocation7], 16
    %v2336 = vld [vmem:[%s2335] sm:$0x1]
    %v2337 = vld [vmem:[%s2335 + $0x1] sm:$0x1]
    %v2338 = vsel %vm65, %v2333, 0.0
    %2339 = vadd.xlane.f32.xlu0 %v2338
    %v2340 = vpop.xlane.xlu0 %2339
    %v2341 = vsel %vm65, %v2334, 0.0
    %2342 = vadd.xlane.f32.xlu0 %v2341
    %v2343 = vpop.xlane.xlu0 %2342
    %v2344 = vmul.f32 %v2340, %v78
    %v2345 = vmul.f32 %v2343, %v78
    %v2346 = vsub.f32 %v2333, %v2344
    %v2347 = vsub.f32 %v2334, %v2345
    %v2348 = vmul.f32 %v2346, %v2346
    %v2349 = vmul.f32 %v2347, %v2347
    %v2350 = vsel %vm65, %v2348, 0.0
    %2351 = vadd.xlane.f32.xlu0 %v2350
    %v2352 = vpop.xlane.xlu0 %2351
    %v2353 = vsel %vm65, %v2349, 0.0
    %2354 = vadd.xlane.f32.xlu0 %v2353
    %v2355 = vpop.xlane.xlu0 %2354
    %v2356 = vmul.f32 %v2352, %v78
    %v2357 = vmul.f32 %v2355, %v78
    %v2358 = vadd.f32 %v2356, 1e-06
    %v2359 = vadd.f32 %v2357, 1e-06
    %v2360 = vrsqrt.pop %v2358
    %v2361 = vmul.f32 %v2360, %v2358
    %v2362 = vmul.f32 %v2361, %v2360
    %v2363 = vmul.f32 0.5, %v2362
    %v2364 = vsub.f32 1.5, %v2363
    %v2365 = vmul.f32 %v2360, %v2364
    %vm2366 = vweird.f32 %v2358
    %vm2367 = vweird.f32 %v2360
    %vm2368 = vmor %vm2366, %vm2367
    %v2369 = vsel %vm2368, %v2360, %v2365
    %v2370 = vrsqrt.pop %v2359
    %v2371 = vmul.f32 %v2370, %v2359
    %v2372 = vmul.f32 %v2371, %v2370
    %v2373 = vmul.f32 0.5, %v2372
    %v2374 = vsub.f32 1.5, %v2373
    %v2375 = vmul.f32 %v2370, %v2374
    %vm2376 = vweird.f32 %v2359
    %vm2377 = vweird.f32 %v2370
    %vm2378 = vmor %vm2376, %vm2377
    %v2379 = vsel %vm2378, %v2370, %v2375
    %v2380 = vmul.f32 %v2346, %v2369
    %v2381 = vmul.f32 %v2347, %v2379
    %v2382 = vperm.slane %v2336, 0
    %v2383 = vmul.f32 %v2380, %v2382
    %v2384 = vmul.f32 %v2381, %v2382
    %v2385 = vperm.slane %v2337, 0
    %v2386 = vadd.f32 %v2383, %v2385
    %v2387 = vadd.f32 %v2384, %v2385
    %2388 = vst.msk [vmem:[#allocation8] sm:$0xff] %vm65, %v2386
    %2389 = vst.msk [vmem:[#allocation8 + $0x8] sm:$0xff] %vm65, %v2387
    // Predicated region
    $region26: #{tpu_custom_call.1} parent=1 // pred_check
      _
    $region27: #{tpu_custom_call.1} parent=1 // pred_check_branch
      %2391 = sbr.rel (0) target = $region29
    $region28: #{tpu_custom_call.1} parent=1 // pred_region
      %2393 = vsyncadd [#allocation4], 0
      %s2394 = sshll.u32 [#allocation8], 4
      %s2395 = int_to_ptr.vmem [resolvable:$true] %s2394
      %s2396 = sshll.u32 %s3, 4
      %s2397 = int_to_ptr.hbm [resolvable:$true] %s2396
      %2402 = dma.vmem_to_hbm [thread:$0]  %s2395, 256, %s2397, [#allocation4], 128, 128, 8
    $region29: #{tpu_custom_call.1} parent=1 // pred_fallthru
      _
    // Predicated region
    $region30: #{tpu_custom_call.1} parent=1 // pred_check
      _
    $region31: #{tpu_custom_call.1} parent=1 // pred_check_branch
      %2404 = sbr.rel (0) target = $region33
    $region32: #{tpu_custom_call.1} parent=1 // pred_region
      %2406 = dma.done [#allocation4], 256
    $region33: #{tpu_custom_call.1} parent=1 // pred_fallthru
      _
    %2407 = vsyncpa [#allocation3], 1
    %2408 = vsyncpa [#allocation6], 1
    %2409 = vsyncpa [#allocation4], 1

</llo_original>
